<compile_context>
chip_gen: v7x
topology: tpu7x:2x2x1
jax: 0.10.0
libtpu: 0.0.40
codegen_flags: <defaults>
</compile_context>

<pallas_src>
import functools

import jax
import jax.numpy as jnp
from jax.experimental import pallas as pl
from jax.experimental.pallas import tpu as pltpu


def crf_fused_kernel(x_ref, w_ref, b_ref, efrom_ref, eto_ref, tgt_ref, msk_ref,
                     loss_ref, sc_ref, part_ref, tg_ref,
                     *, start_tag, end_tag, n_tags, batch, chunk):
    i = pl.program_id(0)
    n = pl.num_programs(0)
    T = n_tags
    TT = T * T
    Bp = part_ref.shape[0]            # padded batch (multiple of 8)
    rows, TTp = sc_ref.shape          # chunk*Bp, T*T padded to 128 lanes

    # ---- fused hidden2tag: bf16 MXU matmul, f32 accumulation, lane-dense out.
    sc_ref[...] = (
        jnp.dot(x_ref[...], w_ref[...], preferred_element_type=jnp.float32)
        + b_ref[...]
    )

    @pl.when(i == 0)
    def _init():
        tg_ref[0] = jnp.float32(0.0)
        # partition <- scores[step 0, :, start_tag, :]
        part_ref[...] = sc_ref[0:Bp, start_tag * T:(start_tag + 1) * T]

    # ---- masked target energy for the whole chunk: one-hot over the flat
    #      T*T lane index (padded lanes never match since target < T*T).
    lane = jax.lax.broadcasted_iota(jnp.int32, (rows, TTp), 1)
    sel = jnp.where(lane == tgt_ref[...], sc_ref[...], 0.0)
    tg_ref[0] = tg_ref[0] + jnp.sum(sel * msk_ref[...])

    # ---- CRF forward recursion over the chunk's steps -----------------------
    e_from = efrom_ref[...]   # (T, TT)  one-hot: broadcast partition over from-groups
    e_to = eto_ref[...]       # (TT, T)  one-hot: sum over from-tags per to-tag

    def step(c, part):
        base = c * Bp                              # multiple of 8 by construction
        sc = sc_ref[pl.ds(base, Bp), :TT]          # (Bp, TT)
        msk = msk_ref[pl.ds(base, Bp), :]          # (Bp, 1)
        part_b = jnp.dot(part, e_from, preferred_element_type=jnp.float32)
        cur = sc + part_b                          # (Bp, TT): scores + partition[from]
        # logsumexp over "from"-tags; stabilized with the per-row max
        # (mathematically identical to the per-column max, differs only for
        #  >80-log-unit spreads which CRF scores never reach).
        m = jnp.max(cur, axis=1, keepdims=True)    # (Bp, 1)
        ex = jnp.exp(cur - m)                      # one dense EUP op
        s = jnp.dot(ex, e_to, preferred_element_type=jnp.float32)   # (Bp, T)
        cur_part = m + jnp.log(s)
        glob = i * chunk + c                       # global sequence step
        upd = jnp.logical_and(glob > 0, msk > 0.0)
        return jnp.where(upd, cur_part, part)

    part_ref[...] = jax.lax.fori_loop(0, chunk, step, part_ref[...], unroll=True)

    @pl.when(i == n - 1)
    def _finish():
        part = part_ref[...]
        bvalid = (jax.lax.broadcasted_iota(jnp.int32, (Bp, 1), 0) < batch
                  ).astype(jnp.float32)            # drop padded batch rows
        part_end = jnp.sum(part[:, end_tag:end_tag + 1] * bvalid)
        loss_ref[0] = (part_end - tg_ref[0]) / batch


def crf_forward(feats, target, mask, weight, bias, *, start_tag, end_tag,
                tagset_size, chunk=8, matmul_dtype=jnp.bfloat16):
    """CRF viterbi-loss forward.

    feats  : (S, B, H) float
    target : (S, B, 1) int    flat index from_tag * T + to_tag
    mask   : (S, B)    {0,1}
    weight : (T*T, H), bias : (T*T,)   -- hidden2tag Linear parameters
    """
    S, B, H = feats.shape
    T = tagset_size
    TT = T * T
    TTp = ((TT + 127) // 128) * 128        # lane-dense matmul output width
    Bp = ((B + 7) // 8) * 8                # sublane-aligned batch
    Sp = ((S + chunk - 1) // chunk) * chunk

    # pad batch / sequence; padded entries carry mask=0 and are excluded later.
    feats_p = jnp.zeros((Sp, Bp, H), matmul_dtype).at[:S, :B].set(
        feats.astype(matmul_dtype))
    tgt_p = jnp.zeros((Sp, Bp), jnp.int32).at[:S, :B].set(
        target[..., 0].astype(jnp.int32))
    mask_p = jnp.zeros((Sp, Bp), jnp.float32).at[:S, :B].set(
        mask.astype(jnp.float32))

    feats2d = feats_p.reshape(Sp * Bp, H)
    tgt2d = tgt_p.reshape(Sp * Bp, 1)
    mask2d = mask_p.reshape(Sp * Bp, 1)

    # hidden2tag weight (H, T*T) zero-padded to TTp lanes; bias likewise.
    w_t = jnp.zeros((H, TTp), matmul_dtype).at[:, :TT].set(
        weight.astype(matmul_dtype).T)
    bias_p = jnp.zeros((1, TTp), jnp.float32).at[:, :TT].set(
        bias.astype(jnp.float32).reshape(1, TT))

    # constant one-hot matrices for the from-tag broadcast / reduction
    fidx = jnp.arange(TT, dtype=jnp.int32) // T     # from-tag of flat index
    tidx = jnp.arange(TT, dtype=jnp.int32) % T      # to-tag of flat index
    e_from = (jnp.arange(T, dtype=jnp.int32)[:, None] == fidx[None, :]
              ).astype(jnp.float32)                 # (T, TT)
    e_to = (tidx[:, None] == jnp.arange(T, dtype=jnp.int32)[None, :]
            ).astype(jnp.float32)                   # (TT, T)

    rows = chunk * Bp
    kern = functools.partial(crf_fused_kernel, start_tag=start_tag,
                             end_tag=end_tag, n_tags=T, batch=B, chunk=chunk)
    # TODO(synk): on v7x a second "parallel" grid axis over batch blocks (one
    # per TensorCore, partial losses reduced in the wrapper) would use both TCs.
    loss = pl.pallas_call(
        kern,
        out_shape=jax.ShapeDtypeStruct((1,), jnp.float32),
        grid_spec=pltpu.PrefetchScalarGridSpec(
            num_scalar_prefetch=0,
            grid=(Sp // chunk,),
            in_specs=[
                pl.BlockSpec((rows, H), lambda i: (i, 0)),    # feats chunk
                pl.BlockSpec((H, TTp), lambda i: (0, 0)),     # weight (resident)
                pl.BlockSpec((1, TTp), lambda i: (0, 0)),     # bias (resident)
                pl.BlockSpec((T, TT), lambda i: (0, 0)),      # e_from (resident)
                pl.BlockSpec((TT, T), lambda i: (0, 0)),      # e_to (resident)
                pl.BlockSpec((rows, 1), lambda i: (i, 0)),    # target chunk
                pl.BlockSpec((rows, 1), lambda i: (i, 0)),    # mask chunk
            ],
            out_specs=pl.BlockSpec(memory_space=pltpu.MemorySpace.SMEM),
            scratch_shapes=[
                pltpu.VMEM((rows, TTp), jnp.float32),   # chunk scores
                pltpu.VMEM((Bp, T), jnp.float32),       # forward partition carry
                pltpu.SMEM((1,), jnp.float32),          # target-energy accumulator
            ],
        ),
        compiler_params=pltpu.CompilerParams(
            dimension_semantics=("arbitrary",),         # sequential recursion carry
            vmem_limit_bytes=32 * 1024 * 1024,
        ),
    )(feats2d, w_t, bias_p, e_from, e_to, tgt2d, mask2d)
    return loss[0]


if __name__ == "__main__":
    S, B, H, T = 8, 4, 32, 8
    START_TAG, END_TAG = T - 2, T - 1

    key = jax.random.PRNGKey(0)
    k1, k2, k3 = jax.random.split(key, 3)

    # deterministic param init mirroring utils.init_linear:
    # weight ~ U(-sqrt(6/(fan_out+fan_in)), +sqrt(...)), bias = 0
    bound = (6.0 / (T * T + H)) ** 0.5
    weight = jax.random.uniform(k1, (T * T, H), jnp.float32, -bound, bound)
    bias = jnp.zeros((T * T,), jnp.float32)

    feats = jax.random.normal(k2, (S, B, H), jnp.float32)

    # plausible tag path: target[t] = prev_tag * T + cur_tag (prev of step 0 is START)
    tags = jax.random.randint(k3, (S, B), 0, T - 2)
    prev = jnp.concatenate([jnp.full((1, B), START_TAG, tags.dtype), tags[:-1]], axis=0)
    target = (prev * T + tags)[..., None].astype(jnp.int32)   # (S, B, 1)

    lens = jnp.array([S, S - 2, S - 1, 5], jnp.int32)
    mask = (jnp.arange(S)[:, None] < lens[None, :]).astype(jnp.float32)  # (S, B)

    loss = crf_forward(feats, target, mask, weight, bias,
                       start_tag=START_TAG, end_tag=END_TAG, tagset_size=T,
                       chunk=4)          # grid of 2 chunks exercises the carry
    loss = jax.block_until_ready(loss)

    # pure-JAX reference (same math as PyTorch get_loss; bf16 matmul inputs to
    # match the kernel's MXU dtype, f32 accumulation).
    scores = (jnp.dot(feats.reshape(S * B, H).astype(jnp.bfloat16),
                      weight.astype(jnp.bfloat16).T,
                      preferred_element_type=jnp.float32)
              + bias).reshape(S, B, T, T)
    tg = jnp.take_along_axis(scores.reshape(S, B, T * T), target, axis=2)[..., 0]
    tg_energy = jnp.sum(tg * mask)
    partition = scores[0, :, START_TAG, :]
    for idx in range(1, S):
        cur = scores[idx] + partition[:, :, None]
        cur_part = jax.scipy.special.logsumexp(cur, axis=1)
        partition = jnp.where(mask[idx][:, None] > 0, cur_part, partition)
    ref_loss = (jnp.sum(partition[:, END_TAG]) - tg_energy) / B

    assert jnp.allclose(loss, ref_loss, rtol=2e-3, atol=2e-3), (loss, ref_loss)
    print("KERNEL_OK")
</pallas_src>

<mosaic_0001>
module attributes {stable_mosaic.version = 11 : i64} {
  func.func @crf_fused_kernel(%arg0: i32, %arg1: memref<32x32xbf16, #tpu.memory_space<vmem>>, %arg2: memref<32x128xbf16, #tpu.memory_space<vmem>>, %arg3: memref<1x128xf32, #tpu.memory_space<vmem>>, %arg4: memref<8x64xf32, #tpu.memory_space<vmem>>, %arg5: memref<64x8xf32, #tpu.memory_space<vmem>>, %arg6: memref<32x1xi32, #tpu.memory_space<vmem>>, %arg7: memref<32x1xf32, #tpu.memory_space<vmem>>, %arg8: memref<1xf32, #tpu.memory_space<smem>>, %arg9: memref<32x128xf32, #tpu.memory_space<vmem>>, %arg10: memref<8x8xf32, #tpu.memory_space<vmem>>, %arg11: memref<1xf32, #tpu.memory_space<smem>>) attributes {dimension_semantics = [#tpu.dimension_semantics<arbitrary>], iteration_bounds = array<i64: 2>, scalar_prefetch = 0 : i64, scratch_operands = 3 : i64, tpu.core_type = #tpu.core_type<tc>, window_params = [{transform_indices = @transform_0, window_bounds = array<i64: 32, 32>}, {pipeline_mode = #tpu.pipeline_mode<synchronous>, transform_indices = @transform_1, window_bounds = array<i64: 32, 128>}, {pipeline_mode = #tpu.pipeline_mode<synchronous>, transform_indices = @transform_2, window_bounds = array<i64: 1, 128>}, {pipeline_mode = #tpu.pipeline_mode<synchronous>, transform_indices = @transform_3, window_bounds = array<i64: 8, 64>}, {pipeline_mode = #tpu.pipeline_mode<synchronous>, transform_indices = @transform_4, window_bounds = array<i64: 64, 8>}, {transform_indices = @transform_5, window_bounds = array<i64: 32, 1>}, {transform_indices = @transform_6, window_bounds = array<i64: 32, 1>}, {transform_indices = @transform_7, window_bounds = array<i64: 1>}]} {
    %c0 = arith.constant 0 : index
    %c0_0 = arith.constant 0 : index
    %0 = vector.load %arg1[%c0, %c0_0] : memref<32x32xbf16, #tpu.memory_space<vmem>>, vector<32x32xbf16>
    %c0_1 = arith.constant 0 : index
    %c0_2 = arith.constant 0 : index
    %1 = vector.load %arg2[%c0_1, %c0_2] : memref<32x128xbf16, #tpu.memory_space<vmem>>, vector<32x128xbf16>
    %cst = arith.constant dense<0.000000e+00> : vector<32x128xf32>
    %2 = tpu.matmul %0, %1, %cst {dimension_numbers = #tpu.dot_dimension_numbers<[1], [0], [0], [1], [0, 0, 1, 1], [], []>} : vector<32x32xbf16>, vector<32x128xbf16>, vector<32x128xf32> -> vector<32x128xf32>
    %c0_3 = arith.constant 0 : index
    %c0_4 = arith.constant 0 : index
    %3 = vector.load %arg3[%c0_3, %c0_4] : memref<1x128xf32, #tpu.memory_space<vmem>>, vector<1x128xf32>
    %4 = vector.broadcast %3 : vector<1x128xf32> to vector<32x128xf32>
    %5 = arith.addf %2, %4 : vector<32x128xf32>
    %c0_5 = arith.constant 0 : index
    %c0_6 = arith.constant 0 : index
    %6 = vector.load %arg9[%c0_5, %c0_6] : memref<32x128xf32, #tpu.memory_space<vmem>>, vector<32x128xf32>
    tpu.vector_store %arg9[%c0_5, %c0_6], %5 {strides = array<i32>} : memref<32x128xf32, #tpu.memory_space<vmem>>, vector<32x128xf32>,
    %c0_i32 = arith.constant 0 : i32
    %7 = arith.cmpi eq, %arg0, %c0_i32 : i32
    %8 = arith.extui %7 : i1 to i32
    %c0_i32_7 = arith.constant 0 : i32
    %9 = arith.cmpi ne, %8, %c0_i32_7 : i32
    scf.if %9 {
      %cst_64 = arith.constant 0.000000e+00 : f32
      %c0_65 = arith.constant 0 : index
      %138 = memref.load %arg11[%c0_65] : memref<1xf32, #tpu.memory_space<smem>>
      memref.store %cst_64, %arg11[%c0_65] : memref<1xf32, #tpu.memory_space<smem>>
      %c0_66 = arith.constant 0 : index
      %c48 = arith.constant 48 : index
      %139 = vector.load %arg9[%c0_66, %c48] : memref<32x128xf32, #tpu.memory_space<vmem>>, vector<8x8xf32>
      %c0_67 = arith.constant 0 : index
      %c0_68 = arith.constant 0 : index
      %140 = vector.load %arg10[%c0_67, %c0_68] : memref<8x8xf32, #tpu.memory_space<vmem>>, vector<8x8xf32>
      tpu.vector_store %arg10[%c0_67, %c0_68], %139 {strides = array<i32>} : memref<8x8xf32, #tpu.memory_space<vmem>>, vector<8x8xf32>,
    } else {
    }
    %10 = tpu.iota {dimensions = array<i32: 1>} : vector<32x128xi32>
    %c0_8 = arith.constant 0 : index
    %c0_9 = arith.constant 0 : index
    %11 = vector.load %arg6[%c0_8, %c0_9] : memref<32x1xi32, #tpu.memory_space<vmem>>, vector<32x1xi32>
    %12 = vector.broadcast %11 : vector<32x1xi32> to vector<32x128xi32>
    %13 = arith.cmpi eq, %10, %12 : vector<32x128xi32>
    %c0_10 = arith.constant 0 : index
    %c0_11 = arith.constant 0 : index
    %14 = vector.load %arg9[%c0_10, %c0_11] : memref<32x128xf32, #tpu.memory_space<vmem>>, vector<32x128xf32>
    %cst_12 = arith.constant 0.000000e+00 : f32
    %15 = vector.broadcast %cst_12 : f32 to vector<32x128xf32>
    %16 = arith.select %13, %14, %15 : vector<32x128xi1>, vector<32x128xf32>
    %c0_13 = arith.constant 0 : index
    %17 = memref.load %arg11[%c0_13] : memref<1xf32, #tpu.memory_space<smem>>
    %c0_14 = arith.constant 0 : index
    %c0_15 = arith.constant 0 : index
    %18 = vector.load %arg7[%c0_14, %c0_15] : memref<32x1xf32, #tpu.memory_space<vmem>>, vector<32x1xf32>
    %19 = vector.broadcast %18 : vector<32x1xf32> to vector<32x128xf32>
    %20 = arith.mulf %16, %19 : vector<32x128xf32>
    %21 = vector.shape_cast %20 : vector<32x128xf32> to vector<1x32x128xf32>
    %cst_16 = arith.constant dense<0.000000e+00> : vector<1xf32>
    %22 = vector.multi_reduction <add>, %21, %cst_16 [1, 2] : vector<1x32x128xf32> to vector<1xf32>
    %23 = vector.shape_cast %22 : vector<1xf32> to vector<1x1x1xf32>
    %24 = vector.extract %23[0, 0, 0] : f32 from vector<1x1x1xf32>
    %25 = arith.addf %17, %24 : f32
    %c0_17 = arith.constant 0 : index
    %26 = memref.load %arg11[%c0_17] : memref<1xf32, #tpu.memory_space<smem>>
    memref.store %25, %arg11[%c0_17] : memref<1xf32, #tpu.memory_space<smem>>
    %c0_18 = arith.constant 0 : index
    %c0_19 = arith.constant 0 : index
    %27 = vector.load %arg4[%c0_18, %c0_19] : memref<8x64xf32, #tpu.memory_space<vmem>>, vector<8x64xf32>
    %c0_20 = arith.constant 0 : index
    %c0_21 = arith.constant 0 : index
    %28 = vector.load %arg5[%c0_20, %c0_21] : memref<64x8xf32, #tpu.memory_space<vmem>>, vector<64x8xf32>
    %c0_22 = arith.constant 0 : index
    %c0_23 = arith.constant 0 : index
    %29 = vector.load %arg10[%c0_22, %c0_23] : memref<8x8xf32, #tpu.memory_space<vmem>>, vector<8x8xf32>
    %c0_i32_24 = arith.constant 0 : i32
    %c8_i32 = arith.constant 8 : i32
    %30 = arith.muli %c0_i32_24, %c8_i32 : i32
    %31 = arith.index_cast %30 : i32 to index
    %c0_25 = arith.constant 0 : index
    %32 = vector.load %arg9[%31, %c0_25] : memref<32x128xf32, #tpu.memory_space<vmem>>, vector<8x64xf32>
    %33 = arith.index_cast %30 : i32 to index
    %c0_26 = arith.constant 0 : index
    %34 = vector.load %arg7[%33, %c0_26] : memref<32x1xf32, #tpu.memory_space<vmem>>, vector<8x1xf32>
    %cst_27 = arith.constant dense<0.000000e+00> : vector<8x64xf32>
    %35 = tpu.matmul %29, %27, %cst_27 {dimension_numbers = #tpu.dot_dimension_numbers<[1], [0], [0], [1], [0, 0, 1, 1], [], []>} : vector<8x8xf32>, vector<8x64xf32>, vector<8x64xf32> -> vector<8x64xf32>
    %36 = arith.addf %32, %35 : vector<8x64xf32>
    %cst_28 = arith.constant dense<0xFF800000> : vector<8xf32>
    %37 = vector.multi_reduction <maximumf>, %36, %cst_28 [1] : vector<8x64xf32> to vector<8xf32>
    %38 = vector.shape_cast %37 : vector<8xf32> to vector<8x1xf32>
    %39 = vector.broadcast %38 : vector<8x1xf32> to vector<8x64xf32>
    %40 = arith.subf %36, %39 : vector<8x64xf32>
    %41 = math.exp %40 : vector<8x64xf32>
    %cst_29 = arith.constant dense<0.000000e+00> : vector<8x8xf32>
    %42 = tpu.matmul %41, %28, %cst_29 {dimension_numbers = #tpu.dot_dimension_numbers<[1], [0], [0], [1], [0, 0, 1, 1], [], []>} : vector<8x64xf32>, vector<64x8xf32>, vector<8x8xf32> -> vector<8x8xf32>
    %43 = math.log %42 : vector<8x8xf32>
    %44 = vector.broadcast %38 : vector<8x1xf32> to vector<8x8xf32>
    %45 = arith.addf %44, %43 : vector<8x8xf32>
    %c4_i32 = arith.constant 4 : i32
    %46 = arith.muli %arg0, %c4_i32 : i32
    %47 = arith.addi %46, %c0_i32_24 : i32
    %c0_i32_30 = arith.constant 0 : i32
    %48 = arith.cmpi sgt, %47, %c0_i32_30 : i32
    %cst_31 = arith.constant 0.000000e+00 : f32
    %49 = vector.broadcast %cst_31 : f32 to vector<8x1xf32>
    %50 = arith.cmpf ogt, %34, %49 : vector<8x1xf32>
    %51 = vector.broadcast %48 : i1 to vector<8x1xi1>
    %52 = arith.andi %51, %50 : vector<8x1xi1>
    %53 = vector.shape_cast %52 : vector<8x1xi1> to vector<8x1xi1>
    %54 = vector.broadcast %53 : vector<8x1xi1> to vector<8x8xi1>
    %55 = arith.select %54, %45, %29 : vector<8x8xi1>, vector<8x8xf32>
    %c1_i32 = arith.constant 1 : i32
    %c8_i32_32 = arith.constant 8 : i32
    %56 = arith.muli %c1_i32, %c8_i32_32 : i32
    %57 = arith.index_cast %56 : i32 to index
    %c0_33 = arith.constant 0 : index
    %58 = vector.load %arg9[%57, %c0_33] : memref<32x128xf32, #tpu.memory_space<vmem>>, vector<8x64xf32>
    %59 = arith.index_cast %56 : i32 to index
    %c0_34 = arith.constant 0 : index
    %60 = vector.load %arg7[%59, %c0_34] : memref<32x1xf32, #tpu.memory_space<vmem>>, vector<8x1xf32>
    %cst_35 = arith.constant dense<0.000000e+00> : vector<8x64xf32>
    %61 = tpu.matmul %55, %27, %cst_35 {dimension_numbers = #tpu.dot_dimension_numbers<[1], [0], [0], [1], [0, 0, 1, 1], [], []>} : vector<8x8xf32>, vector<8x64xf32>, vector<8x64xf32> -> vector<8x64xf32>
    %62 = arith.addf %58, %61 : vector<8x64xf32>
    %cst_36 = arith.constant dense<0xFF800000> : vector<8xf32>
    %63 = vector.multi_reduction <maximumf>, %62, %cst_36 [1] : vector<8x64xf32> to vector<8xf32>
    %64 = vector.shape_cast %63 : vector<8xf32> to vector<8x1xf32>
    %65 = vector.broadcast %64 : vector<8x1xf32> to vector<8x64xf32>
    %66 = arith.subf %62, %65 : vector<8x64xf32>
    %67 = math.exp %66 : vector<8x64xf32>
    %cst_37 = arith.constant dense<0.000000e+00> : vector<8x8xf32>
    %68 = tpu.matmul %67, %28, %cst_37 {dimension_numbers = #tpu.dot_dimension_numbers<[1], [0], [0], [1], [0, 0, 1, 1], [], []>} : vector<8x64xf32>, vector<64x8xf32>, vector<8x8xf32> -> vector<8x8xf32>
    %69 = math.log %68 : vector<8x8xf32>
    %70 = vector.broadcast %64 : vector<8x1xf32> to vector<8x8xf32>
    %71 = arith.addf %70, %69 : vector<8x8xf32>
    %c4_i32_38 = arith.constant 4 : i32
    %72 = arith.muli %arg0, %c4_i32_38 : i32
    %73 = arith.addi %72, %c1_i32 : i32
    %c0_i32_39 = arith.constant 0 : i32
    %74 = arith.cmpi sgt, %73, %c0_i32_39 : i32
    %cst_40 = arith.constant 0.000000e+00 : f32
    %75 = vector.broadcast %cst_40 : f32 to vector<8x1xf32>
    %76 = arith.cmpf ogt, %60, %75 : vector<8x1xf32>
    %77 = vector.broadcast %74 : i1 to vector<8x1xi1>
    %78 = arith.andi %77, %76 : vector<8x1xi1>
    %79 = vector.shape_cast %78 : vector<8x1xi1> to vector<8x1xi1>
    %80 = vector.broadcast %79 : vector<8x1xi1> to vector<8x8xi1>
    %81 = arith.select %80, %71, %55 : vector<8x8xi1>, vector<8x8xf32>
    %c2_i32 = arith.constant 2 : i32
    %c8_i32_41 = arith.constant 8 : i32
    %82 = arith.muli %c2_i32, %c8_i32_41 : i32
    %83 = arith.index_cast %82 : i32 to index
    %c0_42 = arith.constant 0 : index
    %84 = vector.load %arg9[%83, %c0_42] : memref<32x128xf32, #tpu.memory_space<vmem>>, vector<8x64xf32>
    %85 = arith.index_cast %82 : i32 to index
    %c0_43 = arith.constant 0 : index
    %86 = vector.load %arg7[%85, %c0_43] : memref<32x1xf32, #tpu.memory_space<vmem>>, vector<8x1xf32>
    %cst_44 = arith.constant dense<0.000000e+00> : vector<8x64xf32>
    %87 = tpu.matmul %81, %27, %cst_44 {dimension_numbers = #tpu.dot_dimension_numbers<[1], [0], [0], [1], [0, 0, 1, 1], [], []>} : vector<8x8xf32>, vector<8x64xf32>, vector<8x64xf32> -> vector<8x64xf32>
    %88 = arith.addf %84, %87 : vector<8x64xf32>
    %cst_45 = arith.constant dense<0xFF800000> : vector<8xf32>
    %89 = vector.multi_reduction <maximumf>, %88, %cst_45 [1] : vector<8x64xf32> to vector<8xf32>
    %90 = vector.shape_cast %89 : vector<8xf32> to vector<8x1xf32>
    %91 = vector.broadcast %90 : vector<8x1xf32> to vector<8x64xf32>
    %92 = arith.subf %88, %91 : vector<8x64xf32>
    %93 = math.exp %92 : vector<8x64xf32>
    %cst_46 = arith.constant dense<0.000000e+00> : vector<8x8xf32>
    %94 = tpu.matmul %93, %28, %cst_46 {dimension_numbers = #tpu.dot_dimension_numbers<[1], [0], [0], [1], [0, 0, 1, 1], [], []>} : vector<8x64xf32>, vector<64x8xf32>, vector<8x8xf32> -> vector<8x8xf32>
    %95 = math.log %94 : vector<8x8xf32>
    %96 = vector.broadcast %90 : vector<8x1xf32> to vector<8x8xf32>
    %97 = arith.addf %96, %95 : vector<8x8xf32>
    %c4_i32_47 = arith.constant 4 : i32
    %98 = arith.muli %arg0, %c4_i32_47 : i32
    %99 = arith.addi %98, %c2_i32 : i32
    %c0_i32_48 = arith.constant 0 : i32
    %100 = arith.cmpi sgt, %99, %c0_i32_48 : i32
    %cst_49 = arith.constant 0.000000e+00 : f32
    %101 = vector.broadcast %cst_49 : f32 to vector<8x1xf32>
    %102 = arith.cmpf ogt, %86, %101 : vector<8x1xf32>
    %103 = vector.broadcast %100 : i1 to vector<8x1xi1>
    %104 = arith.andi %103, %102 : vector<8x1xi1>
    %105 = vector.shape_cast %104 : vector<8x1xi1> to vector<8x1xi1>
    %106 = vector.broadcast %105 : vector<8x1xi1> to vector<8x8xi1>
    %107 = arith.select %106, %97, %81 : vector<8x8xi1>, vector<8x8xf32>
    %c3_i32 = arith.constant 3 : i32
    %c8_i32_50 = arith.constant 8 : i32
    %108 = arith.muli %c3_i32, %c8_i32_50 : i32
    %109 = arith.index_cast %108 : i32 to index
    %c0_51 = arith.constant 0 : index
    %110 = vector.load %arg9[%109, %c0_51] : memref<32x128xf32, #tpu.memory_space<vmem>>, vector<8x64xf32>
    %111 = arith.index_cast %108 : i32 to index
    %c0_52 = arith.constant 0 : index
    %112 = vector.load %arg7[%111, %c0_52] : memref<32x1xf32, #tpu.memory_space<vmem>>, vector<8x1xf32>
    %cst_53 = arith.constant dense<0.000000e+00> : vector<8x64xf32>
    %113 = tpu.matmul %107, %27, %cst_53 {dimension_numbers = #tpu.dot_dimension_numbers<[1], [0], [0], [1], [0, 0, 1, 1], [], []>} : vector<8x8xf32>, vector<8x64xf32>, vector<8x64xf32> -> vector<8x64xf32>
    %114 = arith.addf %110, %113 : vector<8x64xf32>
    %cst_54 = arith.constant dense<0xFF800000> : vector<8xf32>
    %115 = vector.multi_reduction <maximumf>, %114, %cst_54 [1] : vector<8x64xf32> to vector<8xf32>
    %116 = vector.shape_cast %115 : vector<8xf32> to vector<8x1xf32>
    %117 = vector.broadcast %116 : vector<8x1xf32> to vector<8x64xf32>
    %118 = arith.subf %114, %117 : vector<8x64xf32>
    %119 = math.exp %118 : vector<8x64xf32>
    %cst_55 = arith.constant dense<0.000000e+00> : vector<8x8xf32>
    %120 = tpu.matmul %119, %28, %cst_55 {dimension_numbers = #tpu.dot_dimension_numbers<[1], [0], [0], [1], [0, 0, 1, 1], [], []>} : vector<8x64xf32>, vector<64x8xf32>, vector<8x8xf32> -> vector<8x8xf32>
    %121 = math.log %120 : vector<8x8xf32>
    %122 = vector.broadcast %116 : vector<8x1xf32> to vector<8x8xf32>
    %123 = arith.addf %122, %121 : vector<8x8xf32>
    %c4_i32_56 = arith.constant 4 : i32
    %124 = arith.muli %arg0, %c4_i32_56 : i32
    %125 = arith.addi %124, %c3_i32 : i32
    %c0_i32_57 = arith.constant 0 : i32
    %126 = arith.cmpi sgt, %125, %c0_i32_57 : i32
    %cst_58 = arith.constant 0.000000e+00 : f32
    %127 = vector.broadcast %cst_58 : f32 to vector<8x1xf32>
    %128 = arith.cmpf ogt, %112, %127 : vector<8x1xf32>
    %129 = vector.broadcast %126 : i1 to vector<8x1xi1>
    %130 = arith.andi %129, %128 : vector<8x1xi1>
    %131 = vector.shape_cast %130 : vector<8x1xi1> to vector<8x1xi1>
    %132 = vector.broadcast %131 : vector<8x1xi1> to vector<8x8xi1>
    %133 = arith.select %132, %123, %107 : vector<8x8xi1>, vector<8x8xf32>
    %c4_i32_59 = arith.constant 4 : i32
    %c0_60 = arith.constant 0 : index
    %c0_61 = arith.constant 0 : index
    %134 = vector.load %arg10[%c0_60, %c0_61] : memref<8x8xf32, #tpu.memory_space<vmem>>, vector<8x8xf32>
    tpu.vector_store %arg10[%c0_60, %c0_61], %133 {strides = array<i32>} : memref<8x8xf32, #tpu.memory_space<vmem>>, vector<8x8xf32>,
    %c1_i32_62 = arith.constant 1 : i32
    %135 = arith.cmpi eq, %arg0, %c1_i32_62 : i32
    %136 = arith.extui %135 : i1 to i32
    %c0_i32_63 = arith.constant 0 : i32
    %137 = arith.cmpi ne, %136, %c0_i32_63 : i32
    scf.if %137 {
      %c0_64 = arith.constant 0 : index
      %c0_65 = arith.constant 0 : index
      %138 = vector.load %arg10[%c0_64, %c0_65] : memref<8x8xf32, #tpu.memory_space<vmem>>, vector<8x8xf32>
      %139 = tpu.iota {dimensions = array<i32: 0>} : vector<8x1xi32>
      %c4_i32_66 = arith.constant 4 : i32
      %140 = vector.broadcast %c4_i32_66 : i32 to vector<8x1xi32>
      %141 = arith.cmpi slt, %139, %140 : vector<8x1xi32>
      %142 = arith.extui %141 : vector<8x1xi1> to vector<8x1xi32>
      %143 = arith.sitofp %142 : vector<8x1xi32> to vector<8x1xf32>
      %144 = vector.extract_strided_slice %138 {offsets = [0, 7], sizes = [8, 1], strides = [1, 1]} : vector<8x8xf32> to vector<8x1xf32>
      %145 = arith.mulf %144, %143 : vector<8x1xf32>
      %146 = vector.shape_cast %145 : vector<8x1xf32> to vector<1x8x1xf32>
      %cst_67 = arith.constant dense<0.000000e+00> : vector<1xf32>
      %147 = vector.multi_reduction <add>, %146, %cst_67 [1, 2] : vector<1x8x1xf32> to vector<1xf32>
      %148 = vector.shape_cast %147 : vector<1xf32> to vector<1x1x1xf32>
      %149 = vector.extract %148[0, 0, 0] : f32 from vector<1x1x1xf32>
      %c0_68 = arith.constant 0 : index
      %150 = memref.load %arg11[%c0_68] : memref<1xf32, #tpu.memory_space<smem>>
      %151 = arith.subf %149, %150 : f32
      %cst_69 = arith.constant 4.000000e+00 : f32
      %152 = arith.divf %151, %cst_69 : f32
      %c0_70 = arith.constant 0 : index
      %153 = memref.load %arg8[%c0_70] : memref<1xf32, #tpu.memory_space<smem>>
      memref.store %152, %arg8[%c0_70] : memref<1xf32, #tpu.memory_space<smem>>
    } else {
    }
    return
  }
  func.func @transform_0(%arg0: i32) -> (i32, i32) {
    %c0_i32 = arith.constant 0 : i32
    %c0_i32_0 = arith.constant 0 : i32
    return %arg0, %c0_i32 : i32, i32
  }
  func.func @transform_1(%arg0: i32) -> (i32, i32) {
    %c0_i32 = arith.constant 0 : i32
    %c0_i32_0 = arith.constant 0 : i32
    %c0_i32_1 = arith.constant 0 : i32
    return %c0_i32, %c0_i32_0 : i32, i32
  }
  func.func @transform_2(%arg0: i32) -> (i32, i32) {
    %c0_i32 = arith.constant 0 : i32
    %c0_i32_0 = arith.constant 0 : i32
    %c0_i32_1 = arith.constant 0 : i32
    return %c0_i32, %c0_i32_0 : i32, i32
  }
  func.func @transform_3(%arg0: i32) -> (i32, i32) {
    %c0_i32 = arith.constant 0 : i32
    %c0_i32_0 = arith.constant 0 : i32
    %c0_i32_1 = arith.constant 0 : i32
    return %c0_i32, %c0_i32_0 : i32, i32
  }
  func.func @transform_4(%arg0: i32) -> (i32, i32) {
    %c0_i32 = arith.constant 0 : i32
    %c0_i32_0 = arith.constant 0 : i32
    %c0_i32_1 = arith.constant 0 : i32
    return %c0_i32, %c0_i32_0 : i32, i32
  }
  func.func @transform_5(%arg0: i32) -> (i32, i32) {
    %c0_i32 = arith.constant 0 : i32
    %c0_i32_0 = arith.constant 0 : i32
    return %arg0, %c0_i32 : i32, i32
  }
  func.func @transform_6(%arg0: i32) -> (i32, i32) {
    %c0_i32 = arith.constant 0 : i32
    %c0_i32_0 = arith.constant 0 : i32
    return %arg0, %c0_i32 : i32, i32
  }
  func.func @transform_7(%arg0: i32) -> i32 {
    %c0_i32 = arith.constant 0 : i32
    %c0_i32_0 = arith.constant 0 : i32
    return %c0_i32 : i32
  }
}

</mosaic_0001>

<llo_original>
// kernel: tpu_custom_call.1
$region0: #{tpu_custom_call.1}
  #allocation0 [shape = 'u32[]', space=smem, size = 0x4, offset = 0x4, fixed_abs, tag = 'smem constant byte address 0x4 - core index']
  #allocation1 [shape = 'u32[144,128]{1,0:T(1,128)}', space=vmem, size = 0x12000, scoped, tag = 'internal scratch']
  #allocation2 [shape = 'f32[32,128]{1,0:T(8,128)}', space=vmem, size = 0x4000, scoped, tag = 'scratch operand']
  #allocation3 [shape = 'f32[8,8]{1,0:T(8,128)}', space=vmem, size = 0x1000, scoped, tag = 'scratch operand']
  #allocation4 [shape = 'f32[1]{0:T(128)}', space=smem, size = 0x200, scoped, tag = 'scratch operand']
  %s0 = inlined_call_operand.vmem [shape: bf16[64,32], index: 0, kind: input, shape index: {}]
  %s1 = inlined_call_operand.vmem [shape: bf16[32,128], index: 1, kind: input, shape index: {}]
  %s2 = inlined_call_operand.vmem [shape: f32[1,128], index: 2, kind: input, shape index: {}]
  %s3 = inlined_call_operand.vmem [shape: f32[8,64], index: 3, kind: input, shape index: {}]
  %s4 = inlined_call_operand.vmem [shape: f32[64,8], index: 4, kind: input, shape index: {}]
  %s5 = inlined_call_operand.vmem [shape: s32[64,1], index: 5, kind: input, shape index: {}]
  %s6 = inlined_call_operand.vmem [shape: f32[64,1], index: 6, kind: input, shape index: {}]
  %s7 = inlined_call_operand.hbm [shape: f32[1], index: 7, kind: output, shape index: {}]
  %s8 = sld [smem:[#allocation0]]
  $region69: #{tpu_custom_call.1} parent=0
    _
  %s10 = ssub.s32 1, %s8
  %s11 = scalar_select 0, %s10, %s8
  $region1: #{tpu_custom_call.1} parent=0
    #allocation5 [shape = 'u8[512]{0}', space=smem, size = 0x200, scoped, tag = 'output window, operand 0, single buffered']
    #allocation6 [shape = 's32[2]{0}', space=sflag, size = 0x8, scoped, tag = 'scoped memory for tpu_custom_call.1']
    %12 = vsyncpa [#allocation6], 0
    loop: start=0, step=1, limit=4
    $region2: #{tpu_custom_call.1} parent=1 // loop_pre_header
      _
    $region3: #{tpu_custom_call.1} parent=1 // loop_header
      %s14 = sphi 0, %s18
      %p15 = scmp.ge.s32.totalorder %s14, 4
      %s24 = sphi 0, %s26
      %s27 = sphi 0, %s24
      %s28 = sphi 0, %s27
      %s44 = sphi 0, %s28
      %s48 = sphi 0, %s48
      %s50 = sphi 0, %s48
      %s51 = sphi 0, %s50
      %s65 = sphi 0, %s51
      %s69 = sphi 0, %s69
      %s71 = sphi 0, %s69
      %s72 = sphi 0, %s71
      %s86 = sphi 0, %s72
      %s90 = sphi 0, %s90
      %s92 = sphi 0, %s90
      %s93 = sphi 0, %s92
      %s107 = sphi 0, %s93
      %s111 = sphi 0, %s111
      %s113 = sphi 0, %s111
      %s114 = sphi 0, %s113
      %s128 = sphi 0, %s114
      %s134 = sphi 0, %s136
      %s137 = sphi 0, %s134
      %s138 = sphi 0, %s137
      %s154 = sphi 0, %s138
      %s160 = sphi 0, %s162
      %s163 = sphi 0, %s160
      %s164 = sphi 0, %s163
      %s180 = sphi 0, %s164
      %s184 = sphi 0, %s184
      %s186 = sphi 0, %s184
      %s187 = sphi 0, %s186
      %s201 = sphi 0, %s187
    $region4: #{tpu_custom_call.1} parent=1 // loop_header_branch
      %17 = sbr.rel (%p15) target = $region8
    $region5: #{tpu_custom_call.1} parent=1 // loop_body
      %s19 = ssub.s32 %s14, 1
      %s20 = ssub.s32 %s14, 2
      %s21 = sadd.s32 %s14, 1
      %s22 = ssub.s32 %s14, %s21
      %p23 = scmp.eq.s32.totalorder %s22, 0
      %s25 = sadd.s32 %s24, 1
      %s26 = scalar_select %p23, %s24, %s25
      %p29 = pneg %p23
      %p30 = scmp.eq.s32.totalorder %s14, 1
      %p31 = por %p29, %p30
      %p32 = scmp.ne.s32.totalorder %s24, %s27
      %p33 = scmp.eq.s32.totalorder %s14, 0
      %p34 = por %p32, %p33
      %p35 = scmp.ne.s32.totalorder %s24, %s27
      %p36 = scmp.eq.s32.totalorder %s19, 1
      %p37 = por %p35, %p36
      %p38 = scmp.ne.s32.totalorder %s27, %s28
      %p39 = scmp.eq.s32.totalorder %s19, 0
      %p40 = por %p38, %p39
      %p41 = scmp.ne.s32.totalorder %s27, %s28
      %p42 = scmp.eq.s32.totalorder %s20, 1
      %p43 = por %p41, %p42
      %p45 = scmp.ne.s32.totalorder %s28, %s44
      %p46 = scmp.eq.s32.totalorder %s20, 0
      %p47 = por %p45, %p46
      %s49 = sadd.s32 %s48, 1
      %p52 = scmp.eq.s32.totalorder %s14, 1
      %p53 = scmp.ne.s32.totalorder %s48, %s50
      %p54 = scmp.eq.s32.totalorder %s14, 0
      %p55 = por %p53, %p54
      %p56 = scmp.ne.s32.totalorder %s48, %s50
      %p57 = scmp.eq.s32.totalorder %s19, 1
      %p58 = por %p56, %p57
      %p59 = scmp.ne.s32.totalorder %s50, %s51
      %p60 = scmp.eq.s32.totalorder %s19, 0
      %p61 = por %p59, %p60
      %p62 = scmp.ne.s32.totalorder %s50, %s51
      %p63 = scmp.eq.s32.totalorder %s20, 1
      %p64 = por %p62, %p63
      %p66 = scmp.ne.s32.totalorder %s51, %s65
      %p67 = scmp.eq.s32.totalorder %s20, 0
      %p68 = por %p66, %p67
      %s70 = sadd.s32 %s69, 1
      %p73 = scmp.eq.s32.totalorder %s14, 1
      %p74 = scmp.ne.s32.totalorder %s69, %s71
      %p75 = scmp.eq.s32.totalorder %s14, 0
      %p76 = por %p74, %p75
      %p77 = scmp.ne.s32.totalorder %s69, %s71
      %p78 = scmp.eq.s32.totalorder %s19, 1
      %p79 = por %p77, %p78
      %p80 = scmp.ne.s32.totalorder %s71, %s72
      %p81 = scmp.eq.s32.totalorder %s19, 0
      %p82 = por %p80, %p81
      %p83 = scmp.ne.s32.totalorder %s71, %s72
      %p84 = scmp.eq.s32.totalorder %s20, 1
      %p85 = por %p83, %p84
      %p87 = scmp.ne.s32.totalorder %s72, %s86
      %p88 = scmp.eq.s32.totalorder %s20, 0
      %p89 = por %p87, %p88
      %s91 = sadd.s32 %s90, 1
      %p94 = scmp.eq.s32.totalorder %s14, 1
      %p95 = scmp.ne.s32.totalorder %s90, %s92
      %p96 = scmp.eq.s32.totalorder %s14, 0
      %p97 = por %p95, %p96
      %p98 = scmp.ne.s32.totalorder %s90, %s92
      %p99 = scmp.eq.s32.totalorder %s19, 1
      %p100 = por %p98, %p99
      %p101 = scmp.ne.s32.totalorder %s92, %s93
      %p102 = scmp.eq.s32.totalorder %s19, 0
      %p103 = por %p101, %p102
      %p104 = scmp.ne.s32.totalorder %s92, %s93
      %p105 = scmp.eq.s32.totalorder %s20, 1
      %p106 = por %p104, %p105
      %p108 = scmp.ne.s32.totalorder %s93, %s107
      %p109 = scmp.eq.s32.totalorder %s20, 0
      %p110 = por %p108, %p109
      %s112 = sadd.s32 %s111, 1
      %p115 = scmp.eq.s32.totalorder %s14, 1
      %p116 = scmp.ne.s32.totalorder %s111, %s113
      %p117 = scmp.eq.s32.totalorder %s14, 0
      %p118 = por %p116, %p117
      %p119 = scmp.ne.s32.totalorder %s111, %s113
      %p120 = scmp.eq.s32.totalorder %s19, 1
      %p121 = por %p119, %p120
      %p122 = scmp.ne.s32.totalorder %s113, %s114
      %p123 = scmp.eq.s32.totalorder %s19, 0
      %p124 = por %p122, %p123
      %p125 = scmp.ne.s32.totalorder %s113, %s114
      %p126 = scmp.eq.s32.totalorder %s20, 1
      %p127 = por %p125, %p126
      %p129 = scmp.ne.s32.totalorder %s114, %s128
      %p130 = scmp.eq.s32.totalorder %s20, 0
      %p131 = por %p129, %p130
      %s132 = ssub.s32 %s14, %s21
      %p133 = scmp.eq.s32.totalorder %s132, 0
      %s135 = sadd.s32 %s134, 1
      %s136 = scalar_select %p133, %s134, %s135
      %p139 = pneg %p133
      %p140 = scmp.eq.s32.totalorder %s14, 1
      %p141 = por %p139, %p140
      %p142 = scmp.ne.s32.totalorder %s134, %s137
      %p143 = scmp.eq.s32.totalorder %s14, 0
      %p144 = por %p142, %p143
      %p145 = scmp.ne.s32.totalorder %s134, %s137
      %p146 = scmp.eq.s32.totalorder %s19, 1
      %p147 = por %p145, %p146
      %p148 = scmp.ne.s32.totalorder %s137, %s138
      %p149 = scmp.eq.s32.totalorder %s19, 0
      %p150 = por %p148, %p149
      %p151 = scmp.ne.s32.totalorder %s137, %s138
      %p152 = scmp.eq.s32.totalorder %s20, 1
      %p153 = por %p151, %p152
      %p155 = scmp.ne.s32.totalorder %s138, %s154
      %p156 = scmp.eq.s32.totalorder %s20, 0
      %p157 = por %p155, %p156
      %s158 = ssub.s32 %s14, %s21
      %p159 = scmp.eq.s32.totalorder %s158, 0
      %s161 = sadd.s32 %s160, 1
      %s162 = scalar_select %p159, %s160, %s161
      %p165 = pneg %p159
      %p166 = scmp.eq.s32.totalorder %s14, 1
      %p167 = por %p165, %p166
      %p168 = scmp.ne.s32.totalorder %s160, %s163
      %p169 = scmp.eq.s32.totalorder %s14, 0
      %p170 = por %p168, %p169
      %p171 = scmp.ne.s32.totalorder %s160, %s163
      %p172 = scmp.eq.s32.totalorder %s19, 1
      %p173 = por %p171, %p172
      %p174 = scmp.ne.s32.totalorder %s163, %s164
      %p175 = scmp.eq.s32.totalorder %s19, 0
      %p176 = por %p174, %p175
      %p177 = scmp.ne.s32.totalorder %s163, %s164
      %p178 = scmp.eq.s32.totalorder %s20, 1
      %p179 = por %p177, %p178
      %p181 = scmp.ne.s32.totalorder %s164, %s180
      %p182 = scmp.eq.s32.totalorder %s20, 0
      %p183 = por %p181, %p182
      %s185 = sadd.s32 %s184, 1
      %p188 = scmp.eq.s32.totalorder %s14, 1
      %p189 = scmp.ne.s32.totalorder %s184, %s186
      %p190 = scmp.eq.s32.totalorder %s14, 0
      %p191 = por %p189, %p190
      %p192 = scmp.ne.s32.totalorder %s184, %s186
      %p193 = scmp.eq.s32.totalorder %s19, 1
      %p194 = por %p192, %p193
      %p195 = scmp.ne.s32.totalorder %s186, %s187
      %p196 = scmp.eq.s32.totalorder %s19, 0
      %p197 = por %p195, %p196
      %p198 = scmp.ne.s32.totalorder %s186, %s187
      %p199 = scmp.eq.s32.totalorder %s20, 1
      %p200 = por %p198, %p199
      %p202 = scmp.ne.s32.totalorder %s187, %s201
      %p203 = scmp.eq.s32.totalorder %s20, 0
      %p204 = por %p202, %p203
      %p205 = scmp.le.s32.totalorder 1, %s14
      %p206 = scmp.lt.s32.totalorder %s14, 3
      %p207 = pnand %p205, %p206
      %p208 = pneg %p207
      // Predicated region
      $region9: #{tpu_custom_call.1} parent=5 // pred_check
        _
      $region10: #{tpu_custom_call.1} parent=5 // pred_check_branch
        %210 = sbr.rel (%p207) target = $region12
      $region11: #{tpu_custom_call.1} parent=5 // pred_region
        %s211 = ssub.s32 %s14, 1
        // Predicated region
        $region13: #{tpu_custom_call.1} parent=11 // pred_check
          %p212 = pneg %p61
        $region14: #{tpu_custom_call.1} parent=11 // pred_check_branch
          %214 = sbr.rel (%p212) target = $region16
        $region15: #{tpu_custom_call.1} parent=11 // pred_region
          _
        $region16: #{tpu_custom_call.1} parent=11 // pred_fallthru
          _
        // Predicated region
        $region17: #{tpu_custom_call.1} parent=11 // pred_check
          %p215 = pneg %p82
        $region18: #{tpu_custom_call.1} parent=11 // pred_check_branch
          %217 = sbr.rel (%p215) target = $region20
        $region19: #{tpu_custom_call.1} parent=11 // pred_region
          _
        $region20: #{tpu_custom_call.1} parent=11 // pred_fallthru
          _
        // Predicated region
        $region21: #{tpu_custom_call.1} parent=11 // pred_check
          %p218 = pneg %p103
        $region22: #{tpu_custom_call.1} parent=11 // pred_check_branch
          %220 = sbr.rel (%p218) target = $region24
        $region23: #{tpu_custom_call.1} parent=11 // pred_region
          _
        $region24: #{tpu_custom_call.1} parent=11 // pred_fallthru
          _
        // Predicated region
        $region25: #{tpu_custom_call.1} parent=11 // pred_check
          %p221 = pneg %p124
        $region26: #{tpu_custom_call.1} parent=11 // pred_check_branch
          %223 = sbr.rel (%p221) target = $region28
        $region27: #{tpu_custom_call.1} parent=11 // pred_region
          _
        $region28: #{tpu_custom_call.1} parent=11 // pred_fallthru
          _
      $region12: #{tpu_custom_call.1} parent=5 // pred_fallthru
        _
      %p224 = scmp.lt.s32.totalorder %s14, 2
      // Predicated region
      $region29: #{tpu_custom_call.1} parent=5 // pred_check
        %p225 = pneg %p224
      $region30: #{tpu_custom_call.1} parent=5 // pred_check_branch
        %227 = sbr.rel (%p225) target = $region32
      $region31: #{tpu_custom_call.1} parent=5 // pred_region
        // Predicated region
        $region33: #{tpu_custom_call.1} parent=31 // pred_check
          %p228 = pneg %p34
        $region34: #{tpu_custom_call.1} parent=31 // pred_check_branch
          %230 = sbr.rel (%p228) target = $region36
        $region35: #{tpu_custom_call.1} parent=31 // pred_region
          %s231 = smul.u32 4, %s14
          %p232 = scmp.lt.s32.totalorder %s231, 7
          %s233 = scalar_select %p232, %s231, 7
          %s234 = smul.addr %s233, 4
          %s235 = scalar_lea.vmem %s0, %s234
          %s236 = smul.u32 4, %s14
        $region36: #{tpu_custom_call.1} parent=31 // pred_fallthru
          _
        // Predicated region
        $region37: #{tpu_custom_call.1} parent=31 // pred_check
          %p237 = pneg %p144
        $region38: #{tpu_custom_call.1} parent=31 // pred_check_branch
          %239 = sbr.rel (%p237) target = $region40
        $region39: #{tpu_custom_call.1} parent=31 // pred_region
          %s240 = smul.u32 4, %s14
          %p241 = scmp.lt.s32.totalorder %s240, 7
          %s242 = scalar_select %p241, %s240, 7
          %s243 = smul.addr %s242, 8
          %s244 = scalar_lea.vmem %s5, %s243
          %s245 = smul.u32 4, %s14
        $region40: #{tpu_custom_call.1} parent=31 // pred_fallthru
          _
        // Predicated region
        $region41: #{tpu_custom_call.1} parent=31 // pred_check
          %p246 = pneg %p170
        $region42: #{tpu_custom_call.1} parent=31 // pred_check_branch
          %248 = sbr.rel (%p246) target = $region44
        $region43: #{tpu_custom_call.1} parent=31 // pred_region
          %s249 = smul.u32 4, %s14
          %p250 = scmp.lt.s32.totalorder %s249, 7
          %s251 = scalar_select %p250, %s249, 7
          %s252 = smul.addr %s251, 8
          %s253 = scalar_lea.vmem %s6, %s252
          %s254 = smul.u32 4, %s14
        $region44: #{tpu_custom_call.1} parent=31 // pred_fallthru
          _
      $region32: #{tpu_custom_call.1} parent=5 // pred_fallthru
        _
      %p255 = scmp.le.s32.totalorder 1, %s14
      %p256 = scmp.lt.s32.totalorder %s14, 3
      %p257 = pnand %p255, %p256
      %p258 = pneg %p257
      // Predicated region
      $region45: #{tpu_custom_call.1} parent=5 // pred_check
        _
      $region46: #{tpu_custom_call.1} parent=5 // pred_check_branch
        %260 = sbr.rel (%p257) target = $region48
      $region47: #{tpu_custom_call.1} parent=5 // pred_region
        %s261 = ssub.s32 %s14, 1
        %s262 = smul.u32 4, %s19
        %p263 = scmp.lt.s32.totalorder %s262, 7
        %s264 = scalar_select %p263, %s262, 7
        %s265 = smul.addr %s264, 4
        %s266 = scalar_lea.vmem %s0, %s265
        %p267 = pneg %p40
        %p268 = pneg %p37
        %p269 = pneg %p61
        %p270 = pneg %p58
        %p271 = pneg %p82
        %p272 = pneg %p79
        %p273 = pneg %p103
        %p274 = pneg %p100
        %p275 = pneg %p124
        %p276 = pneg %p121
        %s277 = smul.u32 4, %s19
        %p278 = scmp.lt.s32.totalorder %s277, 7
        %s279 = scalar_select %p278, %s277, 7
        %s280 = smul.addr %s279, 8
        %s281 = scalar_lea.vmem %s5, %s280
        %p282 = pneg %p150
        %p283 = pneg %p147
        %s284 = smul.u32 4, %s19
        %p285 = scmp.lt.s32.totalorder %s284, 7
        %s286 = scalar_select %p285, %s284, 7
        %s287 = smul.addr %s286, 8
        %s288 = scalar_lea.vmem %s6, %s287
        %p289 = pneg %p176
        %p290 = pneg %p173
        %p291 = pneg %p197
        %p292 = pneg %p194
        %s293 = smul.u32 4, %s19
        %p294 = scmp.lt.s32.totalorder %s293, 7
        %s295 = scalar_select %p294, %s293, 7
        %s296 = smul.addr %s295, 4
        %s297 = scalar_lea.vmem %s0, %s296
        %s298 = smul.u32 4, %s19
        %s299 = smul.u32 4, %s19
        %p300 = scmp.lt.s32.totalorder %s299, 7
        %s301 = scalar_select %p300, %s299, 7
        %s302 = smul.addr %s301, 8
        %s303 = scalar_lea.vmem %s5, %s302
        %s304 = smul.u32 4, %s19
        %s305 = smul.u32 4, %s19
        %p306 = scmp.lt.s32.totalorder %s305, 7
        %s307 = scalar_select %p306, %s305, 7
        %s308 = smul.addr %s307, 8
        %s309 = scalar_lea.vmem %s6, %s308
        %s310 = smul.u32 4, %s19
        %v312 = vld [vmem:[%s297] sm:$0xf]
        %v313 = vld [vmem:[%s297 + $0x4] sm:$0xf]
        %v314 = vld [vmem:[%s297 + $0x8] sm:$0xf]
        %v315 = vld [vmem:[%s297 + $0xc] sm:$0xf]
        %v316 = vld [vmem:[%s1] sm:$0xf]
        %v317 = vld [vmem:[%s1 + $0x4] sm:$0xf]
        %v318 = vld [vmem:[%s1 + $0x8] sm:$0xf]
        %v319 = vld [vmem:[%s1 + $0xc] sm:$0xf]
        %v320 = vld [vmem:[%s2] sm:$0x1]
        %v322 = vlaneseq
        %v323 = vshrl.u32 %v322, 7
        %v324 = vsub.s32 0, %v323
        %v325 = vrot.slane %v320, %v324
        %v331 = vunpack.c.l.b16 %v312
        %v332 = vunpack.c.l.b16 %v313
        %v333 = vunpack.c.l.b16 %v314
        %v334 = vunpack.c.l.b16 %v315
        %v335 = vpack.c.b16 %v332, %v331
        %v336 = vpack.c.b16 %v334, %v333
        %v341 = vunpack.c.l.b16 %v316
        %v342 = vunpack.c.l.b16 %v317
        %v343 = vunpack.c.l.b16 %v318
        %v344 = vunpack.c.l.b16 %v319
        %v345 = vpack.c.b16 %v342, %v341
        %v346 = vpack.c.b16 %v344, %v343
        %vm349 = vcmask 261120
        %v351 = vsel %vm349, %v335, 0
        %v354 = vsel %vm349, %v336, 0
        %356 = vmatprep.subr.bf16.mxu0 0
        %357 = vmatpush1.bf16.msra.mxu0 %v345
        %358 = vmatprep.subr.bf16.mxu0 0
        %359 = vmatpush1.bf16.msra.mxu0 %v346
        %360 = vmatprep.subr.bf16.mxu0 0
        %361 = vmatpush1.bf16.msra.mxu0 0
        %362 = vmatprep.subr.bf16.mxu0 0
        %363 = vmatpush1.bf16.msra.mxu0 0
        %364 = vmatprep.subr.bf16.mxu0 0
        %365 = vmatpush1.bf16.msra.mxu0 0
        %366 = vmatprep.subr.bf16.mxu0 0
        %367 = vmatpush1.bf16.msra.mxu0 0
        %368 = vmatprep.subr.bf16.mxu0 0
        %369 = vmatpush1.bf16.msra.mxu0 0
        %370 = vmatprep.subr.bf16.mxu0 0
        %371 = vmatpush1.bf16.msra.mxu0 0
        %372 = vmatprep.subr.bf16.mxu0 0
        %373 = vmatpush1.bf16.msra.mxu0 0
        %374 = vmatprep.subr.bf16.mxu0 0
        %375 = vmatpush1.bf16.msra.mxu0 0
        %376 = vmatprep.subr.bf16.mxu0 0
        %377 = vmatpush1.bf16.msra.mxu0 0
        %378 = vmatprep.subr.bf16.mxu0 0
        %379 = vmatpush1.bf16.msra.mxu0 0
        %380 = vmatprep.subr.bf16.mxu0 0
        %381 = vmatpush1.bf16.msra.mxu0 0
        %382 = vmatprep.subr.bf16.mxu0 0
        %383 = vmatpush1.bf16.msra.mxu0 0
        %384 = vmatprep.subr.bf16.mxu0 0
        %385 = vmatpush1.bf16.msra.mxu0 0
        %386 = vmatprep.subr.bf16.mxu0 0
        %387 = vmatpush1.bf16.msra.mxu0 0
        %388 = vmatprep.mubr.bf16.mxu0 0
        %389 = vmatmul.mubr.bf16.gmra.mrb[0].mxu0 %v351
        %v390 = vpop.f32.mrb[0].mxu0
        %v391 = vadd.f32 %v325, %v390
        %v392 = vpop.f32.mrb[0].mxu0
        %v393 = vpop.f32.mrb[0].mxu0
        %v394 = vadd.f32 %v325, %v393
        %v395 = vpop.f32.mrb[0].mxu0
        %396 = vmatprep.mubr.bf16.mxu0 0
        %397 = vmatmul.mubr.bf16.gmra.mrb[0].mxu0 %v354
        %v398 = vpop.f32.mrb[0].mxu0
        %v399 = vadd.f32 %v325, %v398
        %v400 = vpop.f32.mrb[0].mxu0
        %v401 = vpop.f32.mrb[0].mxu0
        %v402 = vadd.f32 %v325, %v401
        %v403 = vpop.f32.mrb[0].mxu0
        %404 = vdwg.mxu0
        %405 = vst [vmem:[#allocation2] sm:$0xff] %v391
        %406 = vst [vmem:[#allocation2 + $0x8] sm:$0xff] %v394
        %407 = vst [vmem:[#allocation2 + $0x10] sm:$0xff] %v399
        %408 = vst [vmem:[#allocation2 + $0x18] sm:$0xff] %v402
        %p409 = scmp.eq.s32.totalorder %s19, 0
        // Predicated region
        $region49: #{tpu_custom_call.1} parent=47 // pred_check
          %p410 = pneg %p409
        $region50: #{tpu_custom_call.1} parent=47 // pred_check_branch
          %412 = sbr.rel (%p410) target = $region52
        $region51: #{tpu_custom_call.1} parent=47 // pred_region
          %s413 = scalar_lea.smem [#allocation4], 0
          %414 = sst [smem:[%s413]] 0.0
          %v415 = vld [vmem:[#allocation2] sm:$0xff]
          %417 = vrot.lane.b32.xlu0 %v415, 80
          %v418 = vpop.permute.xlu0 %417
          %vm420 = vcmask 64512
          %421 = vst.msk [vmem:[#allocation3] sm:$0xff] %vm420, %v418
        $region52: #{tpu_custom_call.1} parent=47 // pred_fallthru
          _
        %v422 = vlaneseq
        %v423 = vand.u32 %v422, 127
        %v424 = vld [vmem:[%s303] sm:$0xff]
        %v425 = vld [vmem:[%s303 + $0x8] sm:$0xff]
        %v426 = vld [vmem:[%s303 + $0x10] sm:$0xff]
        %v427 = vld [vmem:[%s303 + $0x18] sm:$0xff]
        %428 = vset.pattern.permute.xlu0 0
        %429 = vperm.xlu0 %428, %v424
        %v430 = vpop.permute.xlu0 %429
        %431 = vset.pattern.permute.xlu0 0
        %432 = vperm.xlu0 %431, %v425
        %v433 = vpop.permute.xlu0 %432
        %434 = vset.pattern.permute.xlu0 0
        %435 = vperm.xlu0 %434, %v426
        %v436 = vpop.permute.xlu0 %435
        %437 = vset.pattern.permute.xlu0 0
        %438 = vperm.xlu0 %437, %v427
        %v439 = vpop.permute.xlu0 %438
        %vm440 = vcmp.eq.s32.totalorder %v423, %v430
        %vm441 = vcmp.eq.s32.totalorder %v423, %v433
        %vm442 = vcmp.eq.s32.totalorder %v423, %v436
        %vm443 = vcmp.eq.s32.totalorder %v423, %v439
        %v444 = vld [vmem:[#allocation2] sm:$0xff]
        %v445 = vld [vmem:[#allocation2 + $0x8] sm:$0xff]
        %v446 = vld [vmem:[#allocation2 + $0x10] sm:$0xff]
        %v447 = vld [vmem:[#allocation2 + $0x18] sm:$0xff]
        %v448 = vsel %vm440, %v444, 0.0
        %v449 = vsel %vm441, %v445, 0.0
        %v450 = vsel %vm442, %v446, 0.0
        %v451 = vsel %vm443, %v447, 0.0
        %s452 = sld [smem:[#allocation4]]
        %v453 = vld [vmem:[%s309] sm:$0xff]
        %v454 = vld [vmem:[%s309 + $0x8] sm:$0xff]
        %v455 = vld [vmem:[%s309 + $0x10] sm:$0xff]
        %v456 = vld [vmem:[%s309 + $0x18] sm:$0xff]
        %458 = vset.pattern.permute.xlu0 0
        %459 = vperm.xlu0 %458, %v453
        %v460 = vpop.permute.xlu0 %459
        %463 = vset.pattern.permute.xlu0 0
        %464 = vperm.xlu0 %463, %v454
        %v465 = vpop.permute.xlu0 %464
        %468 = vset.pattern.permute.xlu0 0
        %469 = vperm.xlu0 %468, %v455
        %v470 = vpop.permute.xlu0 %469
        %473 = vset.pattern.permute.xlu0 0
        %474 = vperm.xlu0 %473, %v456
        %v475 = vpop.permute.xlu0 %474
        %v477 = vmul.f32 %v448, %v460
        %v478 = vmul.f32 %v449, %v465
        %v479 = vmul.f32 %v450, %v470
        %v480 = vmul.f32 %v451, %v475
        %v481 = vadd.f32 %v477, %v478
        %v482 = vadd.f32 %v481, %v479
        %v483 = vadd.f32 %v482, %v480
        %484 = vadd.xlane.f32.xlu0 %v483
        %v485 = vpop.xlane.xlu0 %484
        %v486 = vrot.slane %v485, 4
        %v487 = vadd.f32 %v485, %v486
        %v488 = vrot.slane %v487, 2
        %v489 = vadd.f32 %v487, %v488
        %v490 = vrot.slane %v489, 1
        %v491 = vadd.f32 %v489, %v490
        %s492 = vtos %v491
        %s493 = sadd.f32 %s452, %s492
        %s494 = scalar_lea.smem [#allocation4], 0
        %495 = sst [smem:[%s494]] %s493
        %v496 = vld [vmem:[%s3] sm:$0xff]
        %v497 = vld [vmem:[%s4] sm:$0xff]
        %v498 = vld [vmem:[%s4 + $0x8] sm:$0xff]
        %v499 = vld [vmem:[%s4 + $0x10] sm:$0xff]
        %v500 = vld [vmem:[%s4 + $0x18] sm:$0xff]
        %v501 = vld [vmem:[%s4 + $0x20] sm:$0xff]
        %v502 = vld [vmem:[%s4 + $0x28] sm:$0xff]
        %v503 = vld [vmem:[%s4 + $0x30] sm:$0xff]
        %v504 = vld [vmem:[%s4 + $0x38] sm:$0xff]
        %v505 = vld [vmem:[#allocation3] sm:$0xff]
        %v506 = vld [vmem:[#allocation2] sm:$0xff]
        %v507 = vld [vmem:[%s309] sm:$0xff]
        %vm508 = vcmask 64512
        %v510 = vsel %vm508, %v505, 0
        %512 = vmatprep.subr.mxu0 0.0
        %513 = vmatpush1.msra.mxu0 %v496
        %514 = vmatprep.subr.mxu0 0.0
        %515 = vmatpush1.msra.mxu0 0.0
        %516 = vmatprep.subr.mxu0 0.0
        %517 = vmatpush1.msra.mxu0 0.0
        %518 = vmatprep.subr.mxu0 0.0
        %519 = vmatpush1.msra.mxu0 0.0
        %520 = vmatprep.subr.mxu0 0.0
        %521 = vmatpush1.msra.mxu0 0.0
        %522 = vmatprep.subr.mxu0 0.0
        %523 = vmatpush1.msra.mxu0 0.0
        %524 = vmatprep.subr.mxu0 0.0
        %525 = vmatpush1.msra.mxu0 0.0
        %526 = vmatprep.subr.mxu0 0.0
        %527 = vmatpush1.msra.mxu0 0.0
        %528 = vmatprep.subr.mxu0 0.0
        %529 = vmatpush1.msra.mxu0 0.0
        %530 = vmatprep.subr.mxu0 0.0
        %531 = vmatpush1.msra.mxu0 0.0
        %532 = vmatprep.subr.mxu0 0.0
        %533 = vmatpush1.msra.mxu0 0.0
        %534 = vmatprep.subr.mxu0 0.0
        %535 = vmatpush1.msra.mxu0 0.0
        %536 = vmatprep.subr.mxu0 0.0
        %537 = vmatpush1.msra.mxu0 0.0
        %538 = vmatprep.subr.mxu0 0.0
        %539 = vmatpush1.msra.mxu0 0.0
        %540 = vmatprep.subr.mxu0 0.0
        %541 = vmatpush1.msra.mxu0 0.0
        %542 = vmatprep.subr.mxu0 0.0
        %543 = vmatpush1.msra.mxu0 0.0
        %544 = vmatprep.subr.mxu0 0.0
        %545 = vmatpush1.msra.mxu0 0.0
        %546 = vmatprep.subr.mxu0 0.0
        %547 = vmatpush1.msra.mxu0 0.0
        %548 = vmatprep.subr.mxu0 0.0
        %549 = vmatpush1.msra.mxu0 0.0
        %550 = vmatprep.subr.mxu0 0.0
        %551 = vmatpush1.msra.mxu0 0.0
        %552 = vmatprep.subr.mxu0 0.0
        %553 = vmatpush1.msra.mxu0 0.0
        %554 = vmatprep.subr.mxu0 0.0
        %555 = vmatpush1.msra.mxu0 0.0
        %556 = vmatprep.subr.mxu0 0.0
        %557 = vmatpush1.msra.mxu0 0.0
        %558 = vmatprep.subr.mxu0 0.0
        %559 = vmatpush1.msra.mxu0 0.0
        %560 = vmatprep.subr.mxu0 0.0
        %561 = vmatpush1.msra.mxu0 0.0
        %562 = vmatprep.subr.mxu0 0.0
        %563 = vmatpush1.msra.mxu0 0.0
        %564 = vmatprep.subr.mxu0 0.0
        %565 = vmatpush1.msra.mxu0 0.0
        %566 = vmatprep.subr.mxu0 0.0
        %567 = vmatpush1.msra.mxu0 0.0
        %568 = vmatprep.subr.mxu0 0.0
        %569 = vmatpush1.msra.mxu0 0.0
        %570 = vmatprep.subr.mxu0 0.0
        %571 = vmatpush1.msra.mxu0 0.0
        %572 = vmatprep.subr.mxu0 0.0
        %573 = vmatpush1.msra.mxu0 0.0
        %574 = vmatprep.subr.mxu0 0.0
        %575 = vmatpush1.msra.mxu0 0.0
        %576 = vmatprep.mubr.f32.mxu0 0.0
        %577 = vmatmul.mubr.f32.gmra.mrb[0].mxu0 %v510
        %v578 = vpop.f32.mrb[0].mxu0
        %v579 = vadd.f32 0.0, %v578
        %v580 = vpop.f32.mrb[0].mxu0
        %581 = vdwg.mxu0
        %v582 = vadd.f32 %v506, %v579
        %vm583 = vcmask 523264
        %v584 = vsel %vm583, %v582, -inf
        %585 = vmax.xlane.f32.xlu0 %v584
        %v586 = vpop.xlane.xlu0 %585
        %v587 = vsub.f32 %v582, %v586
        %v588 = vmul.f32 %v587, 1.442695
        %v589 = vpow.pop %v588
        %v591 = vsel %vm583, %v589, 0
        %593 = vmatprep.subr.mxu0 0.0
        %594 = vmatpush1.msra.mxu0 %v497
        %595 = vmatprep.subr.mxu0 0.0
        %596 = vmatpush1.msra.mxu0 %v498
        %597 = vmatprep.subr.mxu0 0.0
        %598 = vmatpush1.msra.mxu0 %v499
        %599 = vmatprep.subr.mxu0 0.0
        %600 = vmatpush1.msra.mxu0 %v500
        %601 = vmatprep.subr.mxu0 0.0
        %602 = vmatpush1.msra.mxu0 %v501
        %603 = vmatprep.subr.mxu0 0.0
        %604 = vmatpush1.msra.mxu0 %v502
        %605 = vmatprep.subr.mxu0 0.0
        %606 = vmatpush1.msra.mxu0 %v503
        %607 = vmatprep.subr.mxu0 0.0
        %608 = vmatpush1.msra.mxu0 %v504
        %609 = vmatprep.subr.mxu0 0.0
        %610 = vmatpush1.msra.mxu0 0.0
        %611 = vmatprep.subr.mxu0 0.0
        %612 = vmatpush1.msra.mxu0 0.0
        %613 = vmatprep.subr.mxu0 0.0
        %614 = vmatpush1.msra.mxu0 0.0
        %615 = vmatprep.subr.mxu0 0.0
        %616 = vmatpush1.msra.mxu0 0.0
        %617 = vmatprep.subr.mxu0 0.0
        %618 = vmatpush1.msra.mxu0 0.0
        %619 = vmatprep.subr.mxu0 0.0
        %620 = vmatpush1.msra.mxu0 0.0
        %621 = vmatprep.subr.mxu0 0.0
        %622 = vmatpush1.msra.mxu0 0.0
        %623 = vmatprep.subr.mxu0 0.0
        %624 = vmatpush1.msra.mxu0 0.0
        %625 = vmatprep.subr.mxu0 0.0
        %626 = vmatpush1.msra.mxu0 0.0
        %627 = vmatprep.subr.mxu0 0.0
        %628 = vmatpush1.msra.mxu0 0.0
        %629 = vmatprep.subr.mxu0 0.0
        %630 = vmatpush1.msra.mxu0 0.0
        %631 = vmatprep.subr.mxu0 0.0
        %632 = vmatpush1.msra.mxu0 0.0
        %633 = vmatprep.subr.mxu0 0.0
        %634 = vmatpush1.msra.mxu0 0.0
        %635 = vmatprep.subr.mxu0 0.0
        %636 = vmatpush1.msra.mxu0 0.0
        %637 = vmatprep.subr.mxu0 0.0
        %638 = vmatpush1.msra.mxu0 0.0
        %639 = vmatprep.subr.mxu0 0.0
        %640 = vmatpush1.msra.mxu0 0.0
        %641 = vmatprep.subr.mxu0 0.0
        %642 = vmatpush1.msra.mxu0 0.0
        %643 = vmatprep.subr.mxu0 0.0
        %644 = vmatpush1.msra.mxu0 0.0
        %645 = vmatprep.subr.mxu0 0.0
        %646 = vmatpush1.msra.mxu0 0.0
        %647 = vmatprep.subr.mxu0 0.0
        %648 = vmatpush1.msra.mxu0 0.0
        %649 = vmatprep.subr.mxu0 0.0
        %650 = vmatpush1.msra.mxu0 0.0
        %651 = vmatprep.subr.mxu0 0.0
        %652 = vmatpush1.msra.mxu0 0.0
        %653 = vmatprep.subr.mxu0 0.0
        %654 = vmatpush1.msra.mxu0 0.0
        %655 = vmatprep.subr.mxu0 0.0
        %656 = vmatpush1.msra.mxu0 0.0
        %657 = vmatprep.mubr.f32.mxu0 0.0
        %658 = vmatmul.mubr.f32.gmra.mrb[0].mxu0 %v591
        %v659 = vpop.f32.mrb[0].mxu0
        %v660 = vadd.f32 0.0, %v659
        %v661 = vpop.f32.mrb[0].mxu0
        %662 = vdwg.mxu0
        %v663 = vlog2.pop %v660
        %v664 = vmul.f32 %v663, 0.6931472
        %v665 = vadd.f32 %v586, %v664
        %s666 = smul.u32 %s19, 4
        %p667 = scmp.gt.s32.totalorder %s666, 0
        %vm668 = vcmp.gt.f32.partialorder %v507, 0.0
        %s669 = scalar_select %p667, 1, 0
        %v670 = vstv %s669
        %vm671 = vcmp.eq.s32.totalorder %v670, 1
        %vm672 = vmand %vm671, %vm668
        %v673 = vsel %vm672, 1, 0
        %674 = vset.pattern.permute.xlu0 0
        %675 = vperm.xlu0 %674, %v673
        %v676 = vpop.permute.xlu0 %675
        %vm677 = vcmp.eq.s32.totalorder %v676, 1
        %v678 = vsel %vm677, %v665, %v505
        %v679 = vld [vmem:[#allocation2 + $0x8] sm:$0xff]
        %v680 = vld [vmem:[%s309 + $0x8] sm:$0xff]
        %v682 = vsel %vm508, %v678, 0
        %684 = vmatprep.subr.mxu0 0.0
        %685 = vmatpush1.msra.mxu0 %v496
        %686 = vmatprep.subr.mxu0 0.0
        %687 = vmatpush1.msra.mxu0 0.0
        %688 = vmatprep.subr.mxu0 0.0
        %689 = vmatpush1.msra.mxu0 0.0
        %690 = vmatprep.subr.mxu0 0.0
        %691 = vmatpush1.msra.mxu0 0.0
        %692 = vmatprep.subr.mxu0 0.0
        %693 = vmatpush1.msra.mxu0 0.0
        %694 = vmatprep.subr.mxu0 0.0
        %695 = vmatpush1.msra.mxu0 0.0
        %696 = vmatprep.subr.mxu0 0.0
        %697 = vmatpush1.msra.mxu0 0.0
        %698 = vmatprep.subr.mxu0 0.0
        %699 = vmatpush1.msra.mxu0 0.0
        %700 = vmatprep.subr.mxu0 0.0
        %701 = vmatpush1.msra.mxu0 0.0
        %702 = vmatprep.subr.mxu0 0.0
        %703 = vmatpush1.msra.mxu0 0.0
        %704 = vmatprep.subr.mxu0 0.0
        %705 = vmatpush1.msra.mxu0 0.0
        %706 = vmatprep.subr.mxu0 0.0
        %707 = vmatpush1.msra.mxu0 0.0
        %708 = vmatprep.subr.mxu0 0.0
        %709 = vmatpush1.msra.mxu0 0.0
        %710 = vmatprep.subr.mxu0 0.0
        %711 = vmatpush1.msra.mxu0 0.0
        %712 = vmatprep.subr.mxu0 0.0
        %713 = vmatpush1.msra.mxu0 0.0
        %714 = vmatprep.subr.mxu0 0.0
        %715 = vmatpush1.msra.mxu0 0.0
        %716 = vmatprep.subr.mxu0 0.0
        %717 = vmatpush1.msra.mxu0 0.0
        %718 = vmatprep.subr.mxu0 0.0
        %719 = vmatpush1.msra.mxu0 0.0
        %720 = vmatprep.subr.mxu0 0.0
        %721 = vmatpush1.msra.mxu0 0.0
        %722 = vmatprep.subr.mxu0 0.0
        %723 = vmatpush1.msra.mxu0 0.0
        %724 = vmatprep.subr.mxu0 0.0
        %725 = vmatpush1.msra.mxu0 0.0
        %726 = vmatprep.subr.mxu0 0.0
        %727 = vmatpush1.msra.mxu0 0.0
        %728 = vmatprep.subr.mxu0 0.0
        %729 = vmatpush1.msra.mxu0 0.0
        %730 = vmatprep.subr.mxu0 0.0
        %731 = vmatpush1.msra.mxu0 0.0
        %732 = vmatprep.subr.mxu0 0.0
        %733 = vmatpush1.msra.mxu0 0.0
        %734 = vmatprep.subr.mxu0 0.0
        %735 = vmatpush1.msra.mxu0 0.0
        %736 = vmatprep.subr.mxu0 0.0
        %737 = vmatpush1.msra.mxu0 0.0
        %738 = vmatprep.subr.mxu0 0.0
        %739 = vmatpush1.msra.mxu0 0.0
        %740 = vmatprep.subr.mxu0 0.0
        %741 = vmatpush1.msra.mxu0 0.0
        %742 = vmatprep.subr.mxu0 0.0
        %743 = vmatpush1.msra.mxu0 0.0
        %744 = vmatprep.subr.mxu0 0.0
        %745 = vmatpush1.msra.mxu0 0.0
        %746 = vmatprep.subr.mxu0 0.0
        %747 = vmatpush1.msra.mxu0 0.0
        %748 = vmatprep.mubr.f32.mxu0 0.0
        %749 = vmatmul.mubr.f32.gmra.mrb[0].mxu0 %v682
        %v750 = vpop.f32.mrb[0].mxu0
        %v751 = vadd.f32 0.0, %v750
        %v752 = vpop.f32.mrb[0].mxu0
        %753 = vdwg.mxu0
        %v754 = vadd.f32 %v679, %v751
        %v755 = vsel %vm583, %v754, -inf
        %756 = vmax.xlane.f32.xlu0 %v755
        %v757 = vpop.xlane.xlu0 %756
        %v758 = vsub.f32 %v754, %v757
        %v759 = vmul.f32 %v758, 1.442695
        %v760 = vpow.pop %v759
        %v762 = vsel %vm583, %v760, 0
        %764 = vmatprep.subr.mxu0 0.0
        %765 = vmatpush1.msra.mxu0 %v497
        %766 = vmatprep.subr.mxu0 0.0
        %767 = vmatpush1.msra.mxu0 %v498
        %768 = vmatprep.subr.mxu0 0.0
        %769 = vmatpush1.msra.mxu0 %v499
        %770 = vmatprep.subr.mxu0 0.0
        %771 = vmatpush1.msra.mxu0 %v500
        %772 = vmatprep.subr.mxu0 0.0
        %773 = vmatpush1.msra.mxu0 %v501
        %774 = vmatprep.subr.mxu0 0.0
        %775 = vmatpush1.msra.mxu0 %v502
        %776 = vmatprep.subr.mxu0 0.0
        %777 = vmatpush1.msra.mxu0 %v503
        %778 = vmatprep.subr.mxu0 0.0
        %779 = vmatpush1.msra.mxu0 %v504
        %780 = vmatprep.subr.mxu0 0.0
        %781 = vmatpush1.msra.mxu0 0.0
        %782 = vmatprep.subr.mxu0 0.0
        %783 = vmatpush1.msra.mxu0 0.0
        %784 = vmatprep.subr.mxu0 0.0
        %785 = vmatpush1.msra.mxu0 0.0
        %786 = vmatprep.subr.mxu0 0.0
        %787 = vmatpush1.msra.mxu0 0.0
        %788 = vmatprep.subr.mxu0 0.0
        %789 = vmatpush1.msra.mxu0 0.0
        %790 = vmatprep.subr.mxu0 0.0
        %791 = vmatpush1.msra.mxu0 0.0
        %792 = vmatprep.subr.mxu0 0.0
        %793 = vmatpush1.msra.mxu0 0.0
        %794 = vmatprep.subr.mxu0 0.0
        %795 = vmatpush1.msra.mxu0 0.0
        %796 = vmatprep.subr.mxu0 0.0
        %797 = vmatpush1.msra.mxu0 0.0
        %798 = vmatprep.subr.mxu0 0.0
        %799 = vmatpush1.msra.mxu0 0.0
        %800 = vmatprep.subr.mxu0 0.0
        %801 = vmatpush1.msra.mxu0 0.0
        %802 = vmatprep.subr.mxu0 0.0
        %803 = vmatpush1.msra.mxu0 0.0
        %804 = vmatprep.subr.mxu0 0.0
        %805 = vmatpush1.msra.mxu0 0.0
        %806 = vmatprep.subr.mxu0 0.0
        %807 = vmatpush1.msra.mxu0 0.0
        %808 = vmatprep.subr.mxu0 0.0
        %809 = vmatpush1.msra.mxu0 0.0
        %810 = vmatprep.subr.mxu0 0.0
        %811 = vmatpush1.msra.mxu0 0.0
        %812 = vmatprep.subr.mxu0 0.0
        %813 = vmatpush1.msra.mxu0 0.0
        %814 = vmatprep.subr.mxu0 0.0
        %815 = vmatpush1.msra.mxu0 0.0
        %816 = vmatprep.subr.mxu0 0.0
        %817 = vmatpush1.msra.mxu0 0.0
        %818 = vmatprep.subr.mxu0 0.0
        %819 = vmatpush1.msra.mxu0 0.0
        %820 = vmatprep.subr.mxu0 0.0
        %821 = vmatpush1.msra.mxu0 0.0
        %822 = vmatprep.subr.mxu0 0.0
        %823 = vmatpush1.msra.mxu0 0.0
        %824 = vmatprep.subr.mxu0 0.0
        %825 = vmatpush1.msra.mxu0 0.0
        %826 = vmatprep.subr.mxu0 0.0
        %827 = vmatpush1.msra.mxu0 0.0
        %828 = vmatprep.mubr.f32.mxu0 0.0
        %829 = vmatmul.mubr.f32.gmra.mrb[0].mxu0 %v762
        %v830 = vpop.f32.mrb[0].mxu0
        %v831 = vadd.f32 0.0, %v830
        %v832 = vpop.f32.mrb[0].mxu0
        %833 = vdwg.mxu0
        %v834 = vlog2.pop %v831
        %v835 = vmul.f32 %v834, 0.6931472
        %v836 = vadd.f32 %v757, %v835
        %s837 = sadd.s32 %s666, 1
        %p838 = scmp.gt.s32.totalorder %s837, 0
        %vm839 = vcmp.gt.f32.partialorder %v680, 0.0
        %s840 = scalar_select %p838, 1, 0
        %v841 = vstv %s840
        %vm842 = vcmp.eq.s32.totalorder %v841, 1
        %vm843 = vmand %vm842, %vm839
        %v844 = vsel %vm843, 1, 0
        %845 = vset.pattern.permute.xlu0 0
        %846 = vperm.xlu0 %845, %v844
        %v847 = vpop.permute.xlu0 %846
        %vm848 = vcmp.eq.s32.totalorder %v847, 1
        %v849 = vsel %vm848, %v836, %v678
        %v850 = vld [vmem:[#allocation2 + $0x10] sm:$0xff]
        %v851 = vld [vmem:[%s309 + $0x10] sm:$0xff]
        %v853 = vsel %vm508, %v849, 0
        %855 = vmatprep.subr.mxu0 0.0
        %856 = vmatpush1.msra.mxu0 %v496
        %857 = vmatprep.subr.mxu0 0.0
        %858 = vmatpush1.msra.mxu0 0.0
        %859 = vmatprep.subr.mxu0 0.0
        %860 = vmatpush1.msra.mxu0 0.0
        %861 = vmatprep.subr.mxu0 0.0
        %862 = vmatpush1.msra.mxu0 0.0
        %863 = vmatprep.subr.mxu0 0.0
        %864 = vmatpush1.msra.mxu0 0.0
        %865 = vmatprep.subr.mxu0 0.0
        %866 = vmatpush1.msra.mxu0 0.0
        %867 = vmatprep.subr.mxu0 0.0
        %868 = vmatpush1.msra.mxu0 0.0
        %869 = vmatprep.subr.mxu0 0.0
        %870 = vmatpush1.msra.mxu0 0.0
        %871 = vmatprep.subr.mxu0 0.0
        %872 = vmatpush1.msra.mxu0 0.0
        %873 = vmatprep.subr.mxu0 0.0
        %874 = vmatpush1.msra.mxu0 0.0
        %875 = vmatprep.subr.mxu0 0.0
        %876 = vmatpush1.msra.mxu0 0.0
        %877 = vmatprep.subr.mxu0 0.0
        %878 = vmatpush1.msra.mxu0 0.0
        %879 = vmatprep.subr.mxu0 0.0
        %880 = vmatpush1.msra.mxu0 0.0
        %881 = vmatprep.subr.mxu0 0.0
        %882 = vmatpush1.msra.mxu0 0.0
        %883 = vmatprep.subr.mxu0 0.0
        %884 = vmatpush1.msra.mxu0 0.0
        %885 = vmatprep.subr.mxu0 0.0
        %886 = vmatpush1.msra.mxu0 0.0
        %887 = vmatprep.subr.mxu0 0.0
        %888 = vmatpush1.msra.mxu0 0.0
        %889 = vmatprep.subr.mxu0 0.0
        %890 = vmatpush1.msra.mxu0 0.0
        %891 = vmatprep.subr.mxu0 0.0
        %892 = vmatpush1.msra.mxu0 0.0
        %893 = vmatprep.subr.mxu0 0.0
        %894 = vmatpush1.msra.mxu0 0.0
        %895 = vmatprep.subr.mxu0 0.0
        %896 = vmatpush1.msra.mxu0 0.0
        %897 = vmatprep.subr.mxu0 0.0
        %898 = vmatpush1.msra.mxu0 0.0
        %899 = vmatprep.subr.mxu0 0.0
        %900 = vmatpush1.msra.mxu0 0.0
        %901 = vmatprep.subr.mxu0 0.0
        %902 = vmatpush1.msra.mxu0 0.0
        %903 = vmatprep.subr.mxu0 0.0
        %904 = vmatpush1.msra.mxu0 0.0
        %905 = vmatprep.subr.mxu0 0.0
        %906 = vmatpush1.msra.mxu0 0.0
        %907 = vmatprep.subr.mxu0 0.0
        %908 = vmatpush1.msra.mxu0 0.0
        %909 = vmatprep.subr.mxu0 0.0
        %910 = vmatpush1.msra.mxu0 0.0
        %911 = vmatprep.subr.mxu0 0.0
        %912 = vmatpush1.msra.mxu0 0.0
        %913 = vmatprep.subr.mxu0 0.0
        %914 = vmatpush1.msra.mxu0 0.0
        %915 = vmatprep.subr.mxu0 0.0
        %916 = vmatpush1.msra.mxu0 0.0
        %917 = vmatprep.subr.mxu0 0.0
        %918 = vmatpush1.msra.mxu0 0.0
        %919 = vmatprep.mubr.f32.mxu0 0.0
        %920 = vmatmul.mubr.f32.gmra.mrb[0].mxu0 %v853
        %v921 = vpop.f32.mrb[0].mxu0
        %v922 = vadd.f32 0.0, %v921
        %v923 = vpop.f32.mrb[0].mxu0
        %924 = vdwg.mxu0
        %v925 = vadd.f32 %v850, %v922
        %v926 = vsel %vm583, %v925, -inf
        %927 = vmax.xlane.f32.xlu0 %v926
        %v928 = vpop.xlane.xlu0 %927
        %v929 = vsub.f32 %v925, %v928
        %v930 = vmul.f32 %v929, 1.442695
        %v931 = vpow.pop %v930
        %v933 = vsel %vm583, %v931, 0
        %935 = vmatprep.subr.mxu0 0.0
        %936 = vmatpush1.msra.mxu0 %v497
        %937 = vmatprep.subr.mxu0 0.0
        %938 = vmatpush1.msra.mxu0 %v498
        %939 = vmatprep.subr.mxu0 0.0
        %940 = vmatpush1.msra.mxu0 %v499
        %941 = vmatprep.subr.mxu0 0.0
        %942 = vmatpush1.msra.mxu0 %v500
        %943 = vmatprep.subr.mxu0 0.0
        %944 = vmatpush1.msra.mxu0 %v501
        %945 = vmatprep.subr.mxu0 0.0
        %946 = vmatpush1.msra.mxu0 %v502
        %947 = vmatprep.subr.mxu0 0.0
        %948 = vmatpush1.msra.mxu0 %v503
        %949 = vmatprep.subr.mxu0 0.0
        %950 = vmatpush1.msra.mxu0 %v504
        %951 = vmatprep.subr.mxu0 0.0
        %952 = vmatpush1.msra.mxu0 0.0
        %953 = vmatprep.subr.mxu0 0.0
        %954 = vmatpush1.msra.mxu0 0.0
        %955 = vmatprep.subr.mxu0 0.0
        %956 = vmatpush1.msra.mxu0 0.0
        %957 = vmatprep.subr.mxu0 0.0
        %958 = vmatpush1.msra.mxu0 0.0
        %959 = vmatprep.subr.mxu0 0.0
        %960 = vmatpush1.msra.mxu0 0.0
        %961 = vmatprep.subr.mxu0 0.0
        %962 = vmatpush1.msra.mxu0 0.0
        %963 = vmatprep.subr.mxu0 0.0
        %964 = vmatpush1.msra.mxu0 0.0
        %965 = vmatprep.subr.mxu0 0.0
        %966 = vmatpush1.msra.mxu0 0.0
        %967 = vmatprep.subr.mxu0 0.0
        %968 = vmatpush1.msra.mxu0 0.0
        %969 = vmatprep.subr.mxu0 0.0
        %970 = vmatpush1.msra.mxu0 0.0
        %971 = vmatprep.subr.mxu0 0.0
        %972 = vmatpush1.msra.mxu0 0.0
        %973 = vmatprep.subr.mxu0 0.0
        %974 = vmatpush1.msra.mxu0 0.0
        %975 = vmatprep.subr.mxu0 0.0
        %976 = vmatpush1.msra.mxu0 0.0
        %977 = vmatprep.subr.mxu0 0.0
        %978 = vmatpush1.msra.mxu0 0.0
        %979 = vmatprep.subr.mxu0 0.0
        %980 = vmatpush1.msra.mxu0 0.0
        %981 = vmatprep.subr.mxu0 0.0
        %982 = vmatpush1.msra.mxu0 0.0
        %983 = vmatprep.subr.mxu0 0.0
        %984 = vmatpush1.msra.mxu0 0.0
        %985 = vmatprep.subr.mxu0 0.0
        %986 = vmatpush1.msra.mxu0 0.0
        %987 = vmatprep.subr.mxu0 0.0
        %988 = vmatpush1.msra.mxu0 0.0
        %989 = vmatprep.subr.mxu0 0.0
        %990 = vmatpush1.msra.mxu0 0.0
        %991 = vmatprep.subr.mxu0 0.0
        %992 = vmatpush1.msra.mxu0 0.0
        %993 = vmatprep.subr.mxu0 0.0
        %994 = vmatpush1.msra.mxu0 0.0
        %995 = vmatprep.subr.mxu0 0.0
        %996 = vmatpush1.msra.mxu0 0.0
        %997 = vmatprep.subr.mxu0 0.0
        %998 = vmatpush1.msra.mxu0 0.0
        %999 = vmatprep.mubr.f32.mxu0 0.0
        %1000 = vmatmul.mubr.f32.gmra.mrb[0].mxu0 %v933
        %v1001 = vpop.f32.mrb[0].mxu0
        %v1002 = vadd.f32 0.0, %v1001
        %v1003 = vpop.f32.mrb[0].mxu0
        %1004 = vdwg.mxu0
        %v1005 = vlog2.pop %v1002
        %v1006 = vmul.f32 %v1005, 0.6931472
        %v1007 = vadd.f32 %v928, %v1006
        %s1008 = sadd.s32 %s666, 2
        %p1009 = scmp.gt.s32.totalorder %s1008, 0
        %vm1010 = vcmp.gt.f32.partialorder %v851, 0.0
        %s1011 = scalar_select %p1009, 1, 0
        %v1012 = vstv %s1011
        %vm1013 = vcmp.eq.s32.totalorder %v1012, 1
        %vm1014 = vmand %vm1013, %vm1010
        %v1015 = vsel %vm1014, 1, 0
        %1016 = vset.pattern.permute.xlu0 0
        %1017 = vperm.xlu0 %1016, %v1015
        %v1018 = vpop.permute.xlu0 %1017
        %vm1019 = vcmp.eq.s32.totalorder %v1018, 1
        %v1020 = vsel %vm1019, %v1007, %v849
        %v1021 = vld [vmem:[#allocation2 + $0x18] sm:$0xff]
        %v1022 = vld [vmem:[%s309 + $0x18] sm:$0xff]
        %v1024 = vsel %vm508, %v1020, 0
        %1026 = vmatprep.subr.mxu0 0.0
        %1027 = vmatpush1.msra.mxu0 %v496
        %1028 = vmatprep.subr.mxu0 0.0
        %1029 = vmatpush1.msra.mxu0 0.0
        %1030 = vmatprep.subr.mxu0 0.0
        %1031 = vmatpush1.msra.mxu0 0.0
        %1032 = vmatprep.subr.mxu0 0.0
        %1033 = vmatpush1.msra.mxu0 0.0
        %1034 = vmatprep.subr.mxu0 0.0
        %1035 = vmatpush1.msra.mxu0 0.0
        %1036 = vmatprep.subr.mxu0 0.0
        %1037 = vmatpush1.msra.mxu0 0.0
        %1038 = vmatprep.subr.mxu0 0.0
        %1039 = vmatpush1.msra.mxu0 0.0
        %1040 = vmatprep.subr.mxu0 0.0
        %1041 = vmatpush1.msra.mxu0 0.0
        %1042 = vmatprep.subr.mxu0 0.0
        %1043 = vmatpush1.msra.mxu0 0.0
        %1044 = vmatprep.subr.mxu0 0.0
        %1045 = vmatpush1.msra.mxu0 0.0
        %1046 = vmatprep.subr.mxu0 0.0
        %1047 = vmatpush1.msra.mxu0 0.0
        %1048 = vmatprep.subr.mxu0 0.0
        %1049 = vmatpush1.msra.mxu0 0.0
        %1050 = vmatprep.subr.mxu0 0.0
        %1051 = vmatpush1.msra.mxu0 0.0
        %1052 = vmatprep.subr.mxu0 0.0
        %1053 = vmatpush1.msra.mxu0 0.0
        %1054 = vmatprep.subr.mxu0 0.0
        %1055 = vmatpush1.msra.mxu0 0.0
        %1056 = vmatprep.subr.mxu0 0.0
        %1057 = vmatpush1.msra.mxu0 0.0
        %1058 = vmatprep.subr.mxu0 0.0
        %1059 = vmatpush1.msra.mxu0 0.0
        %1060 = vmatprep.subr.mxu0 0.0
        %1061 = vmatpush1.msra.mxu0 0.0
        %1062 = vmatprep.subr.mxu0 0.0
        %1063 = vmatpush1.msra.mxu0 0.0
        %1064 = vmatprep.subr.mxu0 0.0
        %1065 = vmatpush1.msra.mxu0 0.0
        %1066 = vmatprep.subr.mxu0 0.0
        %1067 = vmatpush1.msra.mxu0 0.0
        %1068 = vmatprep.subr.mxu0 0.0
        %1069 = vmatpush1.msra.mxu0 0.0
        %1070 = vmatprep.subr.mxu0 0.0
        %1071 = vmatpush1.msra.mxu0 0.0
        %1072 = vmatprep.subr.mxu0 0.0
        %1073 = vmatpush1.msra.mxu0 0.0
        %1074 = vmatprep.subr.mxu0 0.0
        %1075 = vmatpush1.msra.mxu0 0.0
        %1076 = vmatprep.subr.mxu0 0.0
        %1077 = vmatpush1.msra.mxu0 0.0
        %1078 = vmatprep.subr.mxu0 0.0
        %1079 = vmatpush1.msra.mxu0 0.0
        %1080 = vmatprep.subr.mxu0 0.0
        %1081 = vmatpush1.msra.mxu0 0.0
        %1082 = vmatprep.subr.mxu0 0.0
        %1083 = vmatpush1.msra.mxu0 0.0
        %1084 = vmatprep.subr.mxu0 0.0
        %1085 = vmatpush1.msra.mxu0 0.0
        %1086 = vmatprep.subr.mxu0 0.0
        %1087 = vmatpush1.msra.mxu0 0.0
        %1088 = vmatprep.subr.mxu0 0.0
        %1089 = vmatpush1.msra.mxu0 0.0
        %1090 = vmatprep.mubr.f32.mxu0 0.0
        %1091 = vmatmul.mubr.f32.gmra.mrb[0].mxu0 %v1024
        %v1092 = vpop.f32.mrb[0].mxu0
        %v1093 = vadd.f32 0.0, %v1092
        %v1094 = vpop.f32.mrb[0].mxu0
        %1095 = vdwg.mxu0
        %v1096 = vadd.f32 %v1021, %v1093
        %v1097 = vsel %vm583, %v1096, -inf
        %1098 = vmax.xlane.f32.xlu0 %v1097
        %v1099 = vpop.xlane.xlu0 %1098
        %v1100 = vsub.f32 %v1096, %v1099
        %v1101 = vmul.f32 %v1100, 1.442695
        %v1102 = vpow.pop %v1101
        %v1104 = vsel %vm583, %v1102, 0
        %1106 = vmatprep.subr.mxu0 0.0
        %1107 = vmatpush1.msra.mxu0 %v497
        %1108 = vmatprep.subr.mxu0 0.0
        %1109 = vmatpush1.msra.mxu0 %v498
        %1110 = vmatprep.subr.mxu0 0.0
        %1111 = vmatpush1.msra.mxu0 %v499
        %1112 = vmatprep.subr.mxu0 0.0
        %1113 = vmatpush1.msra.mxu0 %v500
        %1114 = vmatprep.subr.mxu0 0.0
        %1115 = vmatpush1.msra.mxu0 %v501
        %1116 = vmatprep.subr.mxu0 0.0
        %1117 = vmatpush1.msra.mxu0 %v502
        %1118 = vmatprep.subr.mxu0 0.0
        %1119 = vmatpush1.msra.mxu0 %v503
        %1120 = vmatprep.subr.mxu0 0.0
        %1121 = vmatpush1.msra.mxu0 %v504
        %1122 = vmatprep.subr.mxu0 0.0
        %1123 = vmatpush1.msra.mxu0 0.0
        %1124 = vmatprep.subr.mxu0 0.0
        %1125 = vmatpush1.msra.mxu0 0.0
        %1126 = vmatprep.subr.mxu0 0.0
        %1127 = vmatpush1.msra.mxu0 0.0
        %1128 = vmatprep.subr.mxu0 0.0
        %1129 = vmatpush1.msra.mxu0 0.0
        %1130 = vmatprep.subr.mxu0 0.0
        %1131 = vmatpush1.msra.mxu0 0.0
        %1132 = vmatprep.subr.mxu0 0.0
        %1133 = vmatpush1.msra.mxu0 0.0
        %1134 = vmatprep.subr.mxu0 0.0
        %1135 = vmatpush1.msra.mxu0 0.0
        %1136 = vmatprep.subr.mxu0 0.0
        %1137 = vmatpush1.msra.mxu0 0.0
        %1138 = vmatprep.subr.mxu0 0.0
        %1139 = vmatpush1.msra.mxu0 0.0
        %1140 = vmatprep.subr.mxu0 0.0
        %1141 = vmatpush1.msra.mxu0 0.0
        %1142 = vmatprep.subr.mxu0 0.0
        %1143 = vmatpush1.msra.mxu0 0.0
        %1144 = vmatprep.subr.mxu0 0.0
        %1145 = vmatpush1.msra.mxu0 0.0
        %1146 = vmatprep.subr.mxu0 0.0
        %1147 = vmatpush1.msra.mxu0 0.0
        %1148 = vmatprep.subr.mxu0 0.0
        %1149 = vmatpush1.msra.mxu0 0.0
        %1150 = vmatprep.subr.mxu0 0.0
        %1151 = vmatpush1.msra.mxu0 0.0
        %1152 = vmatprep.subr.mxu0 0.0
        %1153 = vmatpush1.msra.mxu0 0.0
        %1154 = vmatprep.subr.mxu0 0.0
        %1155 = vmatpush1.msra.mxu0 0.0
        %1156 = vmatprep.subr.mxu0 0.0
        %1157 = vmatpush1.msra.mxu0 0.0
        %1158 = vmatprep.subr.mxu0 0.0
        %1159 = vmatpush1.msra.mxu0 0.0
        %1160 = vmatprep.subr.mxu0 0.0
        %1161 = vmatpush1.msra.mxu0 0.0
        %1162 = vmatprep.subr.mxu0 0.0
        %1163 = vmatpush1.msra.mxu0 0.0
        %1164 = vmatprep.subr.mxu0 0.0
        %1165 = vmatpush1.msra.mxu0 0.0
        %1166 = vmatprep.subr.mxu0 0.0
        %1167 = vmatpush1.msra.mxu0 0.0
        %1168 = vmatprep.subr.mxu0 0.0
        %1169 = vmatpush1.msra.mxu0 0.0
        %1170 = vmatprep.mubr.f32.mxu0 0.0
        %1171 = vmatmul.mubr.f32.gmra.mrb[0].mxu0 %v1104
        %v1172 = vpop.f32.mrb[0].mxu0
        %v1173 = vadd.f32 0.0, %v1172
        %v1174 = vpop.f32.mrb[0].mxu0
        %1175 = vdwg.mxu0
        %v1176 = vlog2.pop %v1173
        %v1177 = vmul.f32 %v1176, 0.6931472
        %v1178 = vadd.f32 %v1099, %v1177
        %s1179 = sadd.s32 %s666, 3
        %p1180 = scmp.gt.s32.totalorder %s1179, 0
        %vm1181 = vcmp.gt.f32.partialorder %v1022, 0.0
        %s1182 = scalar_select %p1180, 1, 0
        %v1183 = vstv %s1182
        %vm1184 = vcmp.eq.s32.totalorder %v1183, 1
        %vm1185 = vmand %vm1184, %vm1181
        %v1186 = vsel %vm1185, 1, 0
        %1187 = vset.pattern.permute.xlu0 0
        %1188 = vperm.xlu0 %1187, %v1186
        %v1189 = vpop.permute.xlu0 %1188
        %vm1190 = vcmp.eq.s32.totalorder %v1189, 1
        %v1191 = vsel %vm1190, %v1178, %v1020
        %1192 = vst.msk [vmem:[#allocation3] sm:$0xff] %vm508, %v1191
        %p1193 = scmp.eq.s32.totalorder %s19, 1
        // Predicated region
        $region53: #{tpu_custom_call.1} parent=47 // pred_check
          %p1194 = pneg %p1193
        $region54: #{tpu_custom_call.1} parent=47 // pred_check_branch
          %1196 = sbr.rel (%p1194) target = $region56
        $region55: #{tpu_custom_call.1} parent=47 // pred_region
          %v1197 = vld [vmem:[#allocation3] sm:$0xff]
          %v1198 = vlaneseq
          %v1199 = vshrl.u32 %v1198, 7
          %vm1200 = vcmp.lt.s32.totalorder %v1199, 4
          %v1201 = vsel %vm1200, 1, 0
          %v1202 = vcvt.s32.f32 %v1201
          %v1203 = vmul.f32 %v1197, %v1202
          %1205 = vrot.lane.b32.xlu0 %v1203, 121
          %v1206 = vpop.permute.xlu0 %1205
          %vm1208 = vcmask 7168
          %v1209 = vsel %vm1208, %v1206, 0.0
          %1210 = vadd.xlane.f32.xlu0 %v1209
          %v1211 = vpop.xlane.xlu0 %1210
          %v1212 = vrot.slane %v1211, 4
          %v1213 = vadd.f32 %v1211, %v1212
          %v1214 = vrot.slane %v1213, 2
          %v1215 = vadd.f32 %v1213, %v1214
          %v1216 = vrot.slane %v1215, 1
          %v1217 = vadd.f32 %v1215, %v1216
          %s1218 = vtos %v1217
          %s1219 = sld [smem:[#allocation4]]
          %s1220 = ssub.f32 %s1218, %s1219
          %v1221 = vrcp.pop 4.0
          %s1222 = vtos %v1221
          %s1223 = smul.f32 %s1220, %s1222
          %s1224 = scalar_lea.smem [#allocation5], 0
          %1225 = sst [smem:[%s1224]] %s1223
        $region56: #{tpu_custom_call.1} parent=47 // pred_fallthru
          _
        // Predicated region
        $region57: #{tpu_custom_call.1} parent=47 // pred_check
          %p1226 = pneg %p194
        $region58: #{tpu_custom_call.1} parent=47 // pred_check_branch
          %1228 = sbr.rel (%p1226) target = $region60
        $region59: #{tpu_custom_call.1} parent=47 // pred_region
          %s1230 = ssub.s32 16, 16
          %1231 = vsyncadd [#allocation6], %s1230
          %1234 = dma.smem_to_hbm [#allocation5], 16, %s7, [#allocation6]
        $region60: #{tpu_custom_call.1} parent=47 // pred_fallthru
          _
        // Predicated region
        $region61: #{tpu_custom_call.1} parent=47 // pred_check
          %p1235 = pneg %p194
        $region62: #{tpu_custom_call.1} parent=47 // pred_check_branch
          %1237 = sbr.rel (%p1235) target = $region64
        $region63: #{tpu_custom_call.1} parent=47 // pred_region
          %1238 = dma.done [#allocation6], 16
        $region64: #{tpu_custom_call.1} parent=47 // pred_fallthru
          _
        %1239 = sfence
      $region48: #{tpu_custom_call.1} parent=5 // pred_fallthru
        _
      %p1240 = scmp.le.s32.totalorder 2, %s14
      // Predicated region
      $region65: #{tpu_custom_call.1} parent=5 // pred_check
        %p1241 = pneg %p1240
      $region66: #{tpu_custom_call.1} parent=5 // pred_check_branch
        %1243 = sbr.rel (%p1241) target = $region68
      $region67: #{tpu_custom_call.1} parent=5 // pred_region
        %s1244 = ssub.s32 %s14, 2
      $region68: #{tpu_custom_call.1} parent=5 // pred_fallthru
        _
    $region6: #{tpu_custom_call.1} parent=1 // loop_footer
      %s18 = sadd.s32 1, %s14
    $region7: #{tpu_custom_call.1} parent=1 // loop_footer_branch
      %13 = sbr.rel target = $region3
    $region8: #{tpu_custom_call.1} parent=1 // loop_exit
      _
    %1245 = vsyncpa [#allocation6], 1
    %s1246 = scalar_lea.sflag [#allocation6], 1
    %1247 = vsyncpa %s1246, 1

</llo_original>
